<compile_context>
chip_gen: v7x
topology: tpu7x:2x2x1
jax: 0.10.0
libtpu: 0.0.40
codegen_flags: <defaults>
</compile_context>

<pallas_src>
import functools
import math

import jax
import jax.numpy as jnp
from jax.experimental import pallas as pl
from jax.experimental.pallas import tpu as pltpu

EPS = 1e-5          # PyTorch layer_norm_eps default
OUT_LANES = 128     # lane-dense output width (column 0 holds the result)
LANE = 128

LAYER_PARAMS = ("win", "bin", "wout", "bout", "ln", "w1", "b1", "w2", "b2")
POST_PARAMS = ("p1w", "p1b", "p2w", "p2b")
PARAM_ORDER = LAYER_PARAMS + POST_PARAMS


def _round_up(x, m):
    return ((x + m - 1) // m) * m


def _layernorm_padded(x, gamma, beta, d_real):
    """LayerNorm over the last dim.  x has exact zeros in lanes >= d_real, so
    sums over the padded width equal sums over the real width; mean/variance
    therefore use the real D.  Biased variance (PyTorch semantics).  gamma and
    beta are zero in padded lanes, keeping padded lanes of the output at 0."""
    inv_d = 1.0 / d_real
    mu = jnp.sum(x, axis=-1, keepdims=True) * inv_d
    ex2 = jnp.sum(x * x, axis=-1, keepdims=True) * inv_d
    var = jnp.maximum(ex2 - mu * mu, 0.0)
    return (x - mu) * jax.lax.rsqrt(var + EPS) * gamma + beta


def _make_kernel(block_b, seq, d_real, dp, hp, kt):
    n_kv = seq // kt
    bt = block_b

    def kernel(x_ref, win_ref, bin_ref, wout_ref, bout_ref, ln_ref,
               w1_ref, b1_ref, w2_ref, b2_ref,
               p1w_ref, p1b_ref, p2w_ref, p2b_ref,
               out_ref, x2_ref):
        l = pl.program_id(1)

        # First layer of this batch tile: load the input tile into the
        # activation scratch carried across the layer grid axis.
        @pl.when(l == 0)
        def _():
            x2_ref[...] = x_ref[...].astype(jnp.float32).reshape(bt * seq, dp)

        x2 = x2_ref[...]                                    # (bt*S, DP) f32

        # ---- fused QKV projection: bf16 MXU, f32 accumulate; the attention
        # scale is pre-folded into Wq/bq host-side; each Q/K/V slab is padded
        # to a 128-lane boundary so the slices below are lane-aligned. -------
        qkv = jnp.dot(x2.astype(jnp.bfloat16), win_ref[0],
                      preferred_element_type=jnp.float32) + bin_ref[0]
        q_bf = qkv[:, 0 * dp:1 * dp].reshape(bt, seq, dp).astype(jnp.bfloat16)
        k_bf = qkv[:, 1 * dp:2 * dp].reshape(bt, seq, dp).astype(jnp.bfloat16)
        v_bf = qkv[:, 2 * dp:3 * dp].reshape(bt, seq, dp).astype(jnp.bfloat16)

        # ---- single-head attention: key-chunked online softmax -------------
        m_i = jnp.full((bt, seq, 1), -jnp.inf, jnp.float32)
        l_i = jnp.zeros((bt, seq, 1), jnp.float32)
        acc = jnp.zeros((bt, seq, dp), jnp.float32)
        for c in range(n_kv):
            k_c = k_bf[:, c * kt:(c + 1) * kt, :]
            v_c = v_bf[:, c * kt:(c + 1) * kt, :]
            s_c = jnp.einsum('bqd,bkd->bqk', q_bf, k_c,
                             preferred_element_type=jnp.float32)
            m_new = jnp.maximum(m_i, jnp.max(s_c, axis=-1, keepdims=True))
            alpha = jnp.exp(m_i - m_new)
            p_c = jnp.exp(s_c - m_new)
            l_i = alpha * l_i + jnp.sum(p_c, axis=-1, keepdims=True)
            acc = alpha * acc + jnp.einsum('bqk,bkd->bqd',
                                           p_c.astype(jnp.bfloat16), v_c,
                                           preferred_element_type=jnp.float32)
            m_i = m_new
        ctx = acc * pl.reciprocal(l_i, approx=True)
        ctx2 = ctx.reshape(bt * seq, dp)

        attn_out = jnp.dot(ctx2.astype(jnp.bfloat16), wout_ref[0],
                           preferred_element_type=jnp.float32) + bout_ref[0]

        # residual + norm1 (post-norm, norm_first=False)
        ln = ln_ref[0]                                      # (4, DP) f32
        x2 = _layernorm_padded(x2 + attn_out, ln[0:1, :], ln[1:2, :], d_real)

        # ---- feed-forward: Linear(D,H) -> ReLU -> Linear(H,D) --------------
        h1 = jnp.dot(x2.astype(jnp.bfloat16), w1_ref[0],
                     preferred_element_type=jnp.float32) + b1_ref[0]
        h1 = jnp.maximum(h1, 0.0)
        ff = jnp.dot(h1.astype(jnp.bfloat16), w2_ref[0],
                     preferred_element_type=jnp.float32) + b2_ref[0]

        # residual + norm2
        x2 = _layernorm_padded(x2 + ff, ln[2:3, :], ln[3:4, :], d_real)
        x2_ref[...] = x2

        # ---- last layer: mean-pool over seq, post MLP, sigmoid --------------
        @pl.when(l == pl.num_programs(1) - 1)
        def _():
            pooled = jnp.mean(x2_ref[...].reshape(bt, seq, dp), axis=1)  # (bt, DP)
            p1 = jnp.dot(pooled.astype(jnp.bfloat16), p1w_ref[...],
                         preferred_element_type=jnp.float32) + p1b_ref[...]
            p1 = jnp.maximum(p1, 0.0)
            # p2w is zero-padded to (HP, OUT_LANES); column 0 is the real head.
            logits = jnp.dot(p1.astype(jnp.bfloat16), p2w_ref[...],
                             preferred_element_type=jnp.float32) + p2b_ref[...]
            out_ref[...] = jax.nn.sigmoid(logits).reshape(
                1, bt, OUT_LANES).astype(out_ref.dtype)

    return kernel


def init_params(key, dim_in, dim_hidden, num_layers):
    """Deterministic synthetic parameters, shapes matching the PyTorch module."""
    d, h = dim_in, dim_hidden
    params = []
    for _ in range(num_layers):
        key, *ks = jax.random.split(key, 5)
        params += [
            jax.random.normal(ks[0], (3 * d, d), jnp.float32) * 0.1,  # in_proj_weight
            jnp.zeros((1, 3 * d), jnp.float32),                       # in_proj_bias
            jax.random.normal(ks[1], (d, d), jnp.float32) * 0.1,      # out_proj.weight
            jnp.zeros((1, d), jnp.float32),                           # out_proj.bias
            jnp.ones((1, d), jnp.float32),                            # norm1.weight
            jnp.zeros((1, d), jnp.float32),                           # norm1.bias
            jax.random.normal(ks[2], (h, d), jnp.float32) * 0.1,      # linear1.weight
            jnp.zeros((1, h), jnp.float32),                           # linear1.bias
            jax.random.normal(ks[3], (d, h), jnp.float32) * 0.1,      # linear2.weight
            jnp.zeros((1, d), jnp.float32),                           # linear2.bias
            jnp.ones((1, d), jnp.float32),                            # norm2.weight
            jnp.zeros((1, d), jnp.float32),                           # norm2.bias
        ]
    key, k1, k2 = jax.random.split(key, 3)
    params += [
        jax.random.normal(k1, (h, d), jnp.float32) * 0.1,             # post[0].weight
        jnp.zeros((1, h), jnp.float32),                               # post[0].bias
        jax.random.normal(k2, (1, h), jnp.float32) * 0.1,             # post[2].weight
        jnp.zeros((1, 1), jnp.float32),                               # post[2].bias
    ]
    return params


def _pad2(a, rows, cols):
    out = jnp.zeros((rows, cols), jnp.float32)
    return out.at[:a.shape[0], :a.shape[1]].set(a)


def pack_params(params, num_layers, dim_in, dim_hidden, num_heads=1):
    """Host-side re-layout: pre-transpose to (in, out), fold the attention
    scale into Wq/bq, zero-pad D/H to 128-lane multiples so all stores are
    lane-dense and QKV slabs sit on vreg lane boundaries, cast matmul weights
    to bf16 (biases / LN params stay f32), and stack per-layer weights so
    each layer can be streamed through VMEM one at a time."""
    assert num_heads == 1, "packing implements the module default num_heads=1"
    d, h = dim_in, dim_hidden
    dp = _round_up(d, LANE)
    hp = _round_up(h, LANE)
    scale = 1.0 / math.sqrt(d // num_heads)

    win, bin_, wout, bout, ln, w1, b1, w2, b2 = ([] for _ in range(9))
    idx = 0
    for _ in range(num_layers):
        (ipw, ipb, opw, opb, n1w, n1b,
         l1w, l1b, l2w, l2b, n2w, n2b) = params[idx:idx + 12]
        idx += 12
        # in_proj_weight is (3D, D) rows [Wq; Wk; Wv]; transpose to (D, .),
        # fold the 1/sqrt(head_dim) scale into the Q slab, pad each slab to DP.
        wq, wk, wv = ipw[0:d].T * scale, ipw[d:2 * d].T, ipw[2 * d:3 * d].T
        bfl = ipb.reshape(3 * d)
        bq, bk, bv = bfl[0:d] * scale, bfl[d:2 * d], bfl[2 * d:3 * d]
        w_in = jnp.zeros((dp, 3 * dp), jnp.float32)
        w_in = w_in.at[:d, 0 * dp:0 * dp + d].set(wq)
        w_in = w_in.at[:d, 1 * dp:1 * dp + d].set(wk)
        w_in = w_in.at[:d, 2 * dp:2 * dp + d].set(wv)
        b_in = jnp.zeros((1, 3 * dp), jnp.float32)
        b_in = b_in.at[0, 0 * dp:0 * dp + d].set(bq)
        b_in = b_in.at[0, 1 * dp:1 * dp + d].set(bk)
        b_in = b_in.at[0, 2 * dp:2 * dp + d].set(bv)
        win.append(w_in.astype(jnp.bfloat16))
        bin_.append(b_in)
        wout.append(_pad2(opw.T, dp, dp).astype(jnp.bfloat16))
        bout.append(_pad2(opb.reshape(1, d), 1, dp))
        ln.append(jnp.concatenate(
            [_pad2(n1w.reshape(1, d), 1, dp), _pad2(n1b.reshape(1, d), 1, dp),
             _pad2(n2w.reshape(1, d), 1, dp), _pad2(n2b.reshape(1, d), 1, dp)],
            axis=0))                                          # (4, DP)
        w1.append(_pad2(l1w.T, dp, hp).astype(jnp.bfloat16))
        b1.append(_pad2(l1b.reshape(1, h), 1, hp))
        w2.append(_pad2(l2w.T, hp, dp).astype(jnp.bfloat16))
        b2.append(_pad2(l2b.reshape(1, d), 1, dp))

    p1w, p1b, p2w, p2b = params[idx:idx + 4]
    return {
        "win": jnp.stack(win), "bin": jnp.stack(bin_),
        "wout": jnp.stack(wout), "bout": jnp.stack(bout),
        "ln": jnp.stack(ln),
        "w1": jnp.stack(w1), "b1": jnp.stack(b1),
        "w2": jnp.stack(w2), "b2": jnp.stack(b2),
        "p1w": _pad2(p1w.T, dp, hp).astype(jnp.bfloat16),
        "p1b": _pad2(p1b.reshape(1, h), 1, hp),
        "p2w": _pad2(p2w.T, hp, OUT_LANES).astype(jnp.bfloat16),
        "p2b": _pad2(p2b.reshape(1, 1), 1, OUT_LANES),
    }


def _choose_block_b(batch, seq, dp, kt):
    """Batch-tile size: target ~256 M-rows per matmul (fills the 256-row MXU
    on v6e/v7x), bounded by the per-step attention working set, and keep at
    least 2 batch grid steps when possible so v7x's 2 TensorCores both run."""
    block_b = max(1, min(batch, pl.cdiv(256, seq)))
    budget = 8 * 1024 * 1024   # f32 score-chunk + prob-chunk + ctx accumulator
    while block_b > 1 and block_b * seq * (2 * kt + 2 * dp) * 4 > budget:
        block_b = max(1, block_b // 2)
    if batch >= 2:
        block_b = min(block_b, pl.cdiv(batch, 2))
    return block_b


def _choose_key_chunk(seq):
    if seq <= 512:
        return seq
    for kt in (512, 256, 128):
        if seq % kt == 0:
            return kt
    # TODO(synk): ragged sequence lengths fall back to a full-S softmax chunk.
    return seq


def _vmem_limit_bytes():
    """Derive the scoped-VMEM limit from the device's physical capacity
    (0.85x physical: ~108 MiB on v5e/v6e, ~54 MiB on v7x)."""
    try:
        cap = pltpu.get_tpu_info().vmem_capacity_bytes
    except Exception:
        cap = 64 * 1024 * 1024
    return max(32 * 1024 * 1024, min(int(cap * 0.85), 128 * 1024 * 1024))


@jax.jit
def transformer_forward(x, packed):
    B, S, D = x.shape
    L, DP, _ = packed["win"].shape
    HP = packed["w1"].shape[2]

    KT = _choose_key_chunk(S)
    block_b = _choose_block_b(B, S, DP, KT)
    nb = pl.cdiv(B, block_b)
    B_pad = nb * block_b

    # Host-side zero-pad: batch to the tile multiple, feature dim to DP.
    xp = jnp.zeros((B_pad, S, DP), jnp.float32)
    xp = xp.at[:B, :, :D].set(x.astype(jnp.float32))

    kernel = _make_kernel(block_b, S, D, DP, HP, KT)

    def layer_spec(arr):
        nd = arr.ndim
        return pl.BlockSpec((1,) + arr.shape[1:],
                            lambda b, l, _nd=nd: (l,) + (0,) * (_nd - 1))

    def const_spec(arr):
        nd = arr.ndim
        return pl.BlockSpec(arr.shape, lambda b, l, _nd=nd: (0,) * _nd)

    in_specs = ([pl.BlockSpec((block_b, S, DP), lambda b, l: (b, 0, 0))] +
                [layer_spec(packed[k]) for k in LAYER_PARAMS] +
                [const_spec(packed[k]) for k in POST_PARAMS])
    out_specs = pl.BlockSpec((1, block_b, OUT_LANES), lambda b, l: (b, 0, 0))

    # Advisory cost estimate for the XLA scheduler.
    flops_layer = (2 * S * DP * 3 * DP          # fused QKV
                   + 2 * S * S * DP * 2         # scores + context
                   + 2 * S * DP * DP            # out proj
                   + 2 * S * DP * HP * 2)       # FFN
    flops = B_pad * (L * flops_layer + 2 * DP * HP + 2 * HP * OUT_LANES)
    transcendentals = B_pad * (L * (S * S + 2 * S) + OUT_LANES)
    bytes_w = sum(int(packed[k].size) * packed[k].dtype.itemsize
                  for k in PARAM_ORDER)
    bytes_accessed = int(xp.size) * 4 + int(nb) * bytes_w + B_pad * OUT_LANES * 4
    cost = pl.CostEstimate(flops=int(flops),
                           transcendentals=int(transcendentals),
                           bytes_accessed=int(bytes_accessed))

    out = pl.pallas_call(
        kernel,
        out_shape=jax.ShapeDtypeStruct((nb, block_b, OUT_LANES), jnp.float32),
        grid=(nb, L),
        in_specs=in_specs,
        out_specs=out_specs,
        scratch_shapes=[pltpu.VMEM((block_b * S, DP), jnp.float32)],
        compiler_params=pltpu.CompilerParams(
            dimension_semantics=("parallel", "arbitrary"),
            vmem_limit_bytes=_vmem_limit_bytes()),
        cost_estimate=cost,
    )(xp, *[packed[k] for k in PARAM_ORDER])

    # (nb, block_b, 128) -> (B, 1), matching the PyTorch module output.
    return out.reshape(B_pad, OUT_LANES)[:B, :1]


if __name__ == "__main__":
    # Small shapes consistent with the module's forward (batch x seq x dim_in).
    batch, seq = 2, 8
    dim_in, dim_hidden, num_layers, num_heads = 8, 32, 2, 1

    key = jax.random.PRNGKey(0)
    key, kx = jax.random.split(key)
    x = jax.random.normal(kx, (batch, seq, dim_in), jnp.float32)

    raw_params = init_params(jax.random.PRNGKey(0), dim_in, dim_hidden, num_layers)
    packed = pack_params(raw_params, num_layers, dim_in, dim_hidden, num_heads)

    out = transformer_forward(x, packed)
    out = jax.block_until_ready(out)
    assert out.shape == (batch, 1)
    assert bool(jnp.all(jnp.isfinite(out)))
    print("KERNEL_OK")
</pallas_src>

<mosaic_0001>
module attributes {stable_mosaic.version = 11 : i64} {
  func.func @kernel(%arg0: i32, %arg1: i32, %arg2: memref<1x8x128xf32, #tpu.memory_space<vmem>>, %arg3: memref<1x128x384xbf16, #tpu.memory_space<vmem>>, %arg4: memref<1x1x384xf32, #tpu.memory_space<vmem>>, %arg5: memref<1x128x128xbf16, #tpu.memory_space<vmem>>, %arg6: memref<1x1x128xf32, #tpu.memory_space<vmem>>, %arg7: memref<1x4x128xf32, #tpu.memory_space<vmem>>, %arg8: memref<1x128x128xbf16, #tpu.memory_space<vmem>>, %arg9: memref<1x1x128xf32, #tpu.memory_space<vmem>>, %arg10: memref<1x128x128xbf16, #tpu.memory_space<vmem>>, %arg11: memref<1x1x128xf32, #tpu.memory_space<vmem>>, %arg12: memref<128x128xbf16, #tpu.memory_space<vmem>>, %arg13: memref<1x128xf32, #tpu.memory_space<vmem>>, %arg14: memref<128x128xbf16, #tpu.memory_space<vmem>>, %arg15: memref<1x128xf32, #tpu.memory_space<vmem>>, %arg16: memref<1x1x128xf32, #tpu.memory_space<vmem>>, %arg17: memref<8x128xf32, #tpu.memory_space<vmem>>) attributes {dimension_semantics = [#tpu.dimension_semantics<parallel>, #tpu.dimension_semantics<arbitrary>], iteration_bounds = array<i64: 2, 2>, scalar_prefetch = 0 : i64, scratch_operands = 1 : i64, tpu.core_type = #tpu.core_type<tc>, window_params = [{transform_indices = @transform_0, window_bounds = array<i64: 1, 8, 128>}, {transform_indices = @transform_1, window_bounds = array<i64: 1, 128, 384>}, {transform_indices = @transform_2, window_bounds = array<i64: 1, 1, 384>}, {transform_indices = @transform_3, window_bounds = array<i64: 1, 128, 128>}, {transform_indices = @transform_4, window_bounds = array<i64: 1, 1, 128>}, {transform_indices = @transform_5, window_bounds = array<i64: 1, 4, 128>}, {transform_indices = @transform_6, window_bounds = array<i64: 1, 128, 128>}, {transform_indices = @transform_7, window_bounds = array<i64: 1, 1, 128>}, {transform_indices = @transform_8, window_bounds = array<i64: 1, 128, 128>}, {transform_indices = @transform_9, window_bounds = array<i64: 1, 1, 128>}, {pipeline_mode = #tpu.pipeline_mode<synchronous>, transform_indices = @transform_10, window_bounds = array<i64: 128, 128>}, {pipeline_mode = #tpu.pipeline_mode<synchronous>, transform_indices = @transform_11, window_bounds = array<i64: 1, 128>}, {pipeline_mode = #tpu.pipeline_mode<synchronous>, transform_indices = @transform_12, window_bounds = array<i64: 128, 128>}, {pipeline_mode = #tpu.pipeline_mode<synchronous>, transform_indices = @transform_13, window_bounds = array<i64: 1, 128>}, {transform_indices = @transform_14, window_bounds = array<i64: 1, 1, 128>}]} {
    %c0_i32 = arith.constant 0 : i32
    %0 = arith.cmpi eq, %arg1, %c0_i32 : i32
    %1 = arith.extui %0 : i1 to i32
    %c0_i32_0 = arith.constant 0 : i32
    %2 = arith.cmpi ne, %1, %c0_i32_0 : i32
    scf.if %2 {
      %c0_55 = arith.constant 0 : index
      %c0_56 = arith.constant 0 : index
      %c0_57 = arith.constant 0 : index
      %132 = vector.load %arg2[%c0_55, %c0_56, %c0_57] : memref<1x8x128xf32, #tpu.memory_space<vmem>>, vector<1x8x128xf32>
      %133 = vector.shape_cast %132 : vector<1x8x128xf32> to vector<8x128xf32>
      %c0_58 = arith.constant 0 : index
      %c0_59 = arith.constant 0 : index
      %134 = vector.load %arg17[%c0_58, %c0_59] : memref<8x128xf32, #tpu.memory_space<vmem>>, vector<8x128xf32>
      tpu.vector_store %arg17[%c0_58, %c0_59], %133 {strides = array<i32>} : memref<8x128xf32, #tpu.memory_space<vmem>>, vector<8x128xf32>,
    } else {
    }
    %c0 = arith.constant 0 : index
    %c0_1 = arith.constant 0 : index
    %3 = vector.load %arg17[%c0, %c0_1] : memref<8x128xf32, #tpu.memory_space<vmem>>, vector<8x128xf32>
    %4 = arith.truncf %3 : vector<8x128xf32> to vector<8x128xbf16>
    %c0_2 = arith.constant 0 : index
    %c0_3 = arith.constant 0 : index
    %c0_4 = arith.constant 0 : index
    %5 = vector.load %arg3[%c0_2, %c0_3, %c0_4] : memref<1x128x384xbf16, #tpu.memory_space<vmem>>, vector<1x128x384xbf16>
    %6 = vector.shape_cast %5 : vector<1x128x384xbf16> to vector<128x384xbf16>
    %cst = arith.constant dense<0.000000e+00> : vector<8x384xf32>
    %7 = tpu.matmul %4, %6, %cst {dimension_numbers = #tpu.dot_dimension_numbers<[1], [0], [0], [1], [0, 0, 1, 1], [], []>} : vector<8x128xbf16>, vector<128x384xbf16>, vector<8x384xf32> -> vector<8x384xf32>
    %c0_5 = arith.constant 0 : index
    %c0_6 = arith.constant 0 : index
    %c0_7 = arith.constant 0 : index
    %8 = vector.load %arg4[%c0_5, %c0_6, %c0_7] : memref<1x1x384xf32, #tpu.memory_space<vmem>>, vector<1x1x384xf32>
    %9 = vector.shape_cast %8 : vector<1x1x384xf32> to vector<1x384xf32>
    %10 = vector.broadcast %9 : vector<1x384xf32> to vector<8x384xf32>
    %11 = arith.addf %7, %10 : vector<8x384xf32>
    %12 = vector.extract_strided_slice %11 {offsets = [0, 0], sizes = [8, 128], strides = [1, 1]} : vector<8x384xf32> to vector<8x128xf32>
    %13 = vector.shape_cast %12 : vector<8x128xf32> to vector<1x8x128xf32>
    %14 = arith.truncf %13 : vector<1x8x128xf32> to vector<1x8x128xbf16>
    %15 = vector.extract_strided_slice %11 {offsets = [0, 128], sizes = [8, 128], strides = [1, 1]} : vector<8x384xf32> to vector<8x128xf32>
    %16 = vector.shape_cast %15 : vector<8x128xf32> to vector<1x8x128xf32>
    %17 = arith.truncf %16 : vector<1x8x128xf32> to vector<1x8x128xbf16>
    %18 = vector.extract_strided_slice %11 {offsets = [0, 256], sizes = [8, 128], strides = [1, 1]} : vector<8x384xf32> to vector<8x128xf32>
    %19 = vector.shape_cast %18 : vector<8x128xf32> to vector<1x8x128xf32>
    %20 = arith.truncf %19 : vector<1x8x128xf32> to vector<1x8x128xbf16>
    %cst_8 = arith.constant 0xFF800000 : f32
    %21 = vector.broadcast %cst_8 : f32 to vector<1x8x1xf32>
    %cst_9 = arith.constant 0.000000e+00 : f32
    %22 = vector.broadcast %cst_9 : f32 to vector<1x8x1xf32>
    %cst_10 = arith.constant 0.000000e+00 : f32
    %23 = vector.broadcast %cst_10 : f32 to vector<1x8x128xf32>
    "tpu.trace_start"() <{level = 10 : i32, message = "bqd,bkd->bqk"}> : () -> ()
    %cst_11 = arith.constant dense<0.000000e+00> : vector<1x8x8xf32>
    %24 = tpu.matmul %14, %17, %cst_11 {dimension_numbers = #tpu.dot_dimension_numbers<[2], [2], [1], [1], [0, 0, 0, 1, 1, 1], [0], [0]>} : vector<1x8x128xbf16>, vector<1x8x128xbf16>, vector<1x8x8xf32> -> vector<1x8x8xf32>
    "tpu.trace_stop"() : () -> ()
    %cst_12 = arith.constant dense<0xFF800000> : vector<1x8xf32>
    %25 = vector.multi_reduction <maximumf>, %24, %cst_12 [2] : vector<1x8x8xf32> to vector<1x8xf32>
    %26 = vector.shape_cast %25 : vector<1x8xf32> to vector<1x8x1xf32>
    %27 = arith.maximumf %21, %26 : vector<1x8x1xf32>
    %28 = arith.subf %21, %27 : vector<1x8x1xf32>
    %29 = math.exp %28 : vector<1x8x1xf32>
    %30 = vector.broadcast %27 : vector<1x8x1xf32> to vector<1x8x8xf32>
    %31 = arith.subf %24, %30 : vector<1x8x8xf32>
    %32 = math.exp %31 : vector<1x8x8xf32>
    %33 = arith.mulf %29, %22 : vector<1x8x1xf32>
    %cst_13 = arith.constant dense<0.000000e+00> : vector<1x8xf32>
    %34 = vector.multi_reduction <add>, %32, %cst_13 [2] : vector<1x8x8xf32> to vector<1x8xf32>
    %35 = vector.shape_cast %34 : vector<1x8xf32> to vector<1x8x1xf32>
    %36 = arith.addf %33, %35 : vector<1x8x1xf32>
    %37 = vector.broadcast %29 : vector<1x8x1xf32> to vector<1x8x128xf32>
    %38 = arith.mulf %37, %23 : vector<1x8x128xf32>
    %39 = arith.truncf %32 : vector<1x8x8xf32> to vector<1x8x8xbf16>
    "tpu.trace_start"() <{level = 10 : i32, message = "bqk,bkd->bqd"}> : () -> ()
    %cst_14 = arith.constant dense<0.000000e+00> : vector<1x8x128xf32>
    %40 = tpu.matmul %39, %20, %cst_14 {dimension_numbers = #tpu.dot_dimension_numbers<[2], [1], [1], [2], [0, 0, 0, 1, 1, 2], [0], [0]>} : vector<1x8x8xbf16>, vector<1x8x128xbf16>, vector<1x8x128xf32> -> vector<1x8x128xf32>
    "tpu.trace_stop"() : () -> ()
    %41 = arith.addf %38, %40 : vector<1x8x128xf32>
    %42 = tpu.reciprocal %36 {approx = true} : vector<1x8x1xf32> -> vector<1x8x1xf32>
    %43 = vector.broadcast %42 : vector<1x8x1xf32> to vector<1x8x128xf32>
    %44 = arith.mulf %41, %43 : vector<1x8x128xf32>
    %45 = vector.shape_cast %44 : vector<1x8x128xf32> to vector<8x128xf32>
    %46 = arith.truncf %45 : vector<8x128xf32> to vector<8x128xbf16>
    %c0_15 = arith.constant 0 : index
    %c0_16 = arith.constant 0 : index
    %c0_17 = arith.constant 0 : index
    %47 = vector.load %arg5[%c0_15, %c0_16, %c0_17] : memref<1x128x128xbf16, #tpu.memory_space<vmem>>, vector<1x128x128xbf16>
    %48 = vector.shape_cast %47 : vector<1x128x128xbf16> to vector<128x128xbf16>
    %cst_18 = arith.constant dense<0.000000e+00> : vector<8x128xf32>
    %49 = tpu.matmul %46, %48, %cst_18 {dimension_numbers = #tpu.dot_dimension_numbers<[1], [0], [0], [1], [0, 0, 1, 1], [], []>} : vector<8x128xbf16>, vector<128x128xbf16>, vector<8x128xf32> -> vector<8x128xf32>
    %c0_19 = arith.constant 0 : index
    %c0_20 = arith.constant 0 : index
    %c0_21 = arith.constant 0 : index
    %50 = vector.load %arg6[%c0_19, %c0_20, %c0_21] : memref<1x1x128xf32, #tpu.memory_space<vmem>>, vector<1x1x128xf32>
    %51 = vector.shape_cast %50 : vector<1x1x128xf32> to vector<1x128xf32>
    %52 = vector.broadcast %51 : vector<1x128xf32> to vector<8x128xf32>
    %53 = arith.addf %49, %52 : vector<8x128xf32>
    %c0_22 = arith.constant 0 : index
    %c0_23 = arith.constant 0 : index
    %c0_24 = arith.constant 0 : index
    %54 = vector.load %arg7[%c0_22, %c0_23, %c0_24] : memref<1x4x128xf32, #tpu.memory_space<vmem>>, vector<1x4x128xf32>
    %55 = vector.shape_cast %54 : vector<1x4x128xf32> to vector<4x128xf32>
    %56 = arith.addf %3, %53 : vector<8x128xf32>
    %57 = vector.extract_strided_slice %55 {offsets = [0, 0], sizes = [1, 128], strides = [1, 1]} : vector<4x128xf32> to vector<1x128xf32>
    %58 = vector.extract_strided_slice %55 {offsets = [1, 0], sizes = [1, 128], strides = [1, 1]} : vector<4x128xf32> to vector<1x128xf32>
    %cst_25 = arith.constant dense<0.000000e+00> : vector<8xf32>
    %59 = vector.multi_reduction <add>, %56, %cst_25 [1] : vector<8x128xf32> to vector<8xf32>
    %60 = vector.shape_cast %59 : vector<8xf32> to vector<8x1xf32>
    %cst_26 = arith.constant 1.250000e-01 : f32
    %61 = vector.broadcast %cst_26 : f32 to vector<8x1xf32>
    %62 = arith.mulf %60, %61 : vector<8x1xf32>
    %63 = arith.mulf %56, %56 : vector<8x128xf32>
    %cst_27 = arith.constant dense<0.000000e+00> : vector<8xf32>
    %64 = vector.multi_reduction <add>, %63, %cst_27 [1] : vector<8x128xf32> to vector<8xf32>
    %65 = vector.shape_cast %64 : vector<8xf32> to vector<8x1xf32>
    %cst_28 = arith.constant 1.250000e-01 : f32
    %66 = vector.broadcast %cst_28 : f32 to vector<8x1xf32>
    %67 = arith.mulf %65, %66 : vector<8x1xf32>
    %68 = arith.mulf %62, %62 : vector<8x1xf32>
    %69 = arith.subf %67, %68 : vector<8x1xf32>
    %cst_29 = arith.constant 0.000000e+00 : f32
    %70 = vector.broadcast %cst_29 : f32 to vector<8x1xf32>
    %71 = arith.maximumf %69, %70 : vector<8x1xf32>
    %72 = vector.broadcast %62 : vector<8x1xf32> to vector<8x128xf32>
    %73 = arith.subf %56, %72 : vector<8x128xf32>
    %cst_30 = arith.constant 9.99999974E-6 : f32
    %74 = vector.broadcast %cst_30 : f32 to vector<8x1xf32>
    %75 = arith.addf %71, %74 : vector<8x1xf32>
    %76 = math.rsqrt %75 : vector<8x1xf32>
    %77 = vector.broadcast %76 : vector<8x1xf32> to vector<8x128xf32>
    %78 = arith.mulf %73, %77 : vector<8x128xf32>
    %79 = vector.broadcast %57 : vector<1x128xf32> to vector<8x128xf32>
    %80 = arith.mulf %78, %79 : vector<8x128xf32>
    %81 = vector.broadcast %58 : vector<1x128xf32> to vector<8x128xf32>
    %82 = arith.addf %80, %81 : vector<8x128xf32>
    %83 = arith.truncf %82 : vector<8x128xf32> to vector<8x128xbf16>
    %c0_31 = arith.constant 0 : index
    %c0_32 = arith.constant 0 : index
    %c0_33 = arith.constant 0 : index
    %84 = vector.load %arg8[%c0_31, %c0_32, %c0_33] : memref<1x128x128xbf16, #tpu.memory_space<vmem>>, vector<1x128x128xbf16>
    %85 = vector.shape_cast %84 : vector<1x128x128xbf16> to vector<128x128xbf16>
    %cst_34 = arith.constant dense<0.000000e+00> : vector<8x128xf32>
    %86 = tpu.matmul %83, %85, %cst_34 {dimension_numbers = #tpu.dot_dimension_numbers<[1], [0], [0], [1], [0, 0, 1, 1], [], []>} : vector<8x128xbf16>, vector<128x128xbf16>, vector<8x128xf32> -> vector<8x128xf32>
    %c0_35 = arith.constant 0 : index
    %c0_36 = arith.constant 0 : index
    %c0_37 = arith.constant 0 : index
    %87 = vector.load %arg9[%c0_35, %c0_36, %c0_37] : memref<1x1x128xf32, #tpu.memory_space<vmem>>, vector<1x1x128xf32>
    %88 = vector.shape_cast %87 : vector<1x1x128xf32> to vector<1x128xf32>
    %89 = vector.broadcast %88 : vector<1x128xf32> to vector<8x128xf32>
    %90 = arith.addf %86, %89 : vector<8x128xf32>
    %cst_38 = arith.constant 0.000000e+00 : f32
    %91 = vector.broadcast %cst_38 : f32 to vector<8x128xf32>
    %92 = arith.maximumf %90, %91 : vector<8x128xf32>
    %93 = arith.truncf %92 : vector<8x128xf32> to vector<8x128xbf16>
    %c0_39 = arith.constant 0 : index
    %c0_40 = arith.constant 0 : index
    %c0_41 = arith.constant 0 : index
    %94 = vector.load %arg10[%c0_39, %c0_40, %c0_41] : memref<1x128x128xbf16, #tpu.memory_space<vmem>>, vector<1x128x128xbf16>
    %95 = vector.shape_cast %94 : vector<1x128x128xbf16> to vector<128x128xbf16>
    %cst_42 = arith.constant dense<0.000000e+00> : vector<8x128xf32>
    %96 = tpu.matmul %93, %95, %cst_42 {dimension_numbers = #tpu.dot_dimension_numbers<[1], [0], [0], [1], [0, 0, 1, 1], [], []>} : vector<8x128xbf16>, vector<128x128xbf16>, vector<8x128xf32> -> vector<8x128xf32>
    %c0_43 = arith.constant 0 : index
    %c0_44 = arith.constant 0 : index
    %c0_45 = arith.constant 0 : index
    %97 = vector.load %arg11[%c0_43, %c0_44, %c0_45] : memref<1x1x128xf32, #tpu.memory_space<vmem>>, vector<1x1x128xf32>
    %98 = vector.shape_cast %97 : vector<1x1x128xf32> to vector<1x128xf32>
    %99 = vector.broadcast %98 : vector<1x128xf32> to vector<8x128xf32>
    %100 = arith.addf %96, %99 : vector<8x128xf32>
    %101 = arith.addf %82, %100 : vector<8x128xf32>
    %102 = vector.extract_strided_slice %55 {offsets = [2, 0], sizes = [1, 128], strides = [1, 1]} : vector<4x128xf32> to vector<1x128xf32>
    %103 = vector.extract_strided_slice %55 {offsets = [3, 0], sizes = [1, 128], strides = [1, 1]} : vector<4x128xf32> to vector<1x128xf32>
    %cst_46 = arith.constant dense<0.000000e+00> : vector<8xf32>
    %104 = vector.multi_reduction <add>, %101, %cst_46 [1] : vector<8x128xf32> to vector<8xf32>
    %105 = vector.shape_cast %104 : vector<8xf32> to vector<8x1xf32>
    %cst_47 = arith.constant 1.250000e-01 : f32
    %106 = vector.broadcast %cst_47 : f32 to vector<8x1xf32>
    %107 = arith.mulf %105, %106 : vector<8x1xf32>
    %108 = arith.mulf %101, %101 : vector<8x128xf32>
    %cst_48 = arith.constant dense<0.000000e+00> : vector<8xf32>
    %109 = vector.multi_reduction <add>, %108, %cst_48 [1] : vector<8x128xf32> to vector<8xf32>
    %110 = vector.shape_cast %109 : vector<8xf32> to vector<8x1xf32>
    %cst_49 = arith.constant 1.250000e-01 : f32
    %111 = vector.broadcast %cst_49 : f32 to vector<8x1xf32>
    %112 = arith.mulf %110, %111 : vector<8x1xf32>
    %113 = arith.mulf %107, %107 : vector<8x1xf32>
    %114 = arith.subf %112, %113 : vector<8x1xf32>
    %cst_50 = arith.constant 0.000000e+00 : f32
    %115 = vector.broadcast %cst_50 : f32 to vector<8x1xf32>
    %116 = arith.maximumf %114, %115 : vector<8x1xf32>
    %117 = vector.broadcast %107 : vector<8x1xf32> to vector<8x128xf32>
    %118 = arith.subf %101, %117 : vector<8x128xf32>
    %cst_51 = arith.constant 9.99999974E-6 : f32
    %119 = vector.broadcast %cst_51 : f32 to vector<8x1xf32>
    %120 = arith.addf %116, %119 : vector<8x1xf32>
    %121 = math.rsqrt %120 : vector<8x1xf32>
    %122 = vector.broadcast %121 : vector<8x1xf32> to vector<8x128xf32>
    %123 = arith.mulf %118, %122 : vector<8x128xf32>
    %124 = vector.broadcast %102 : vector<1x128xf32> to vector<8x128xf32>
    %125 = arith.mulf %123, %124 : vector<8x128xf32>
    %126 = vector.broadcast %103 : vector<1x128xf32> to vector<8x128xf32>
    %127 = arith.addf %125, %126 : vector<8x128xf32>
    %c0_52 = arith.constant 0 : index
    %c0_53 = arith.constant 0 : index
    %128 = vector.load %arg17[%c0_52, %c0_53] : memref<8x128xf32, #tpu.memory_space<vmem>>, vector<8x128xf32>
    tpu.vector_store %arg17[%c0_52, %c0_53], %127 {strides = array<i32>} : memref<8x128xf32, #tpu.memory_space<vmem>>, vector<8x128xf32>,
    %c1_i32 = arith.constant 1 : i32
    %129 = arith.cmpi eq, %arg1, %c1_i32 : i32
    %130 = arith.extui %129 : i1 to i32
    %c0_i32_54 = arith.constant 0 : i32
    %131 = arith.cmpi ne, %130, %c0_i32_54 : i32
    scf.if %131 {
      %c0_55 = arith.constant 0 : index
      %c0_56 = arith.constant 0 : index
      %132 = vector.load %arg17[%c0_55, %c0_56] : memref<8x128xf32, #tpu.memory_space<vmem>>, vector<8x128xf32>
      %133 = vector.shape_cast %132 : vector<8x128xf32> to vector<1x8x128xf32>
      %cst_57 = arith.constant dense<0.000000e+00> : vector<1x128xf32>
      %134 = vector.multi_reduction <add>, %133, %cst_57 [1] : vector<1x8x128xf32> to vector<1x128xf32>
      %cst_58 = arith.constant 8.000000e+00 : f32
      %135 = vector.broadcast %cst_58 : f32 to vector<1x128xf32>
      %136 = arith.divf %134, %135 : vector<1x128xf32>
      %137 = arith.truncf %136 : vector<1x128xf32> to vector<1x128xbf16>
      %c0_59 = arith.constant 0 : index
      %c0_60 = arith.constant 0 : index
      %138 = vector.load %arg12[%c0_59, %c0_60] : memref<128x128xbf16, #tpu.memory_space<vmem>>, vector<128x128xbf16>
      %cst_61 = arith.constant dense<0.000000e+00> : vector<1x128xf32>
      %139 = tpu.matmul %137, %138, %cst_61 {dimension_numbers = #tpu.dot_dimension_numbers<[1], [0], [0], [1], [0, 0, 1, 1], [], []>} : vector<1x128xbf16>, vector<128x128xbf16>, vector<1x128xf32> -> vector<1x128xf32>
      %c0_62 = arith.constant 0 : index
      %c0_63 = arith.constant 0 : index
      %140 = vector.load %arg13[%c0_62, %c0_63] : memref<1x128xf32, #tpu.memory_space<vmem>>, vector<1x128xf32>
      %141 = arith.addf %139, %140 : vector<1x128xf32>
      %cst_64 = arith.constant 0.000000e+00 : f32
      %142 = vector.broadcast %cst_64 : f32 to vector<1x128xf32>
      %143 = arith.maximumf %141, %142 : vector<1x128xf32>
      %144 = arith.truncf %143 : vector<1x128xf32> to vector<1x128xbf16>
      %c0_65 = arith.constant 0 : index
      %c0_66 = arith.constant 0 : index
      %145 = vector.load %arg14[%c0_65, %c0_66] : memref<128x128xbf16, #tpu.memory_space<vmem>>, vector<128x128xbf16>
      %cst_67 = arith.constant dense<0.000000e+00> : vector<1x128xf32>
      %146 = tpu.matmul %144, %145, %cst_67 {dimension_numbers = #tpu.dot_dimension_numbers<[1], [0], [0], [1], [0, 0, 1, 1], [], []>} : vector<1x128xbf16>, vector<128x128xbf16>, vector<1x128xf32> -> vector<1x128xf32>
      %c0_68 = arith.constant 0 : index
      %c0_69 = arith.constant 0 : index
      %147 = vector.load %arg15[%c0_68, %c0_69] : memref<1x128xf32, #tpu.memory_space<vmem>>, vector<1x128xf32>
      %148 = arith.addf %146, %147 : vector<1x128xf32>
      %149 = arith.negf %148 : vector<1x128xf32>
      %150 = math.exp %149 : vector<1x128xf32>
      %cst_70 = arith.constant 1.000000e+00 : f32
      %151 = vector.broadcast %cst_70 : f32 to vector<1x128xf32>
      %152 = arith.addf %151, %150 : vector<1x128xf32>
      %153 = arith.divf %151, %152 : vector<1x128xf32>
      %154 = vector.shape_cast %153 : vector<1x128xf32> to vector<1x1x128xf32>
      %c0_71 = arith.constant 0 : index
      %c0_72 = arith.constant 0 : index
      %c0_73 = arith.constant 0 : index
      %155 = vector.load %arg16[%c0_71, %c0_72, %c0_73] : memref<1x1x128xf32, #tpu.memory_space<vmem>>, vector<1x1x128xf32>
      tpu.vector_store %arg16[%c0_71, %c0_72, %c0_73], %154 {strides = array<i32>} : memref<1x1x128xf32, #tpu.memory_space<vmem>>, vector<1x1x128xf32>,
    } else {
    }
    return
  }
  func.func @transform_0(%arg0: i32, %arg1: i32) -> (i32, i32, i32) {
    %c0_i32 = arith.constant 0 : i32
    %c0_i32_0 = arith.constant 0 : i32
    %c0_i32_1 = arith.constant 0 : i32
    return %arg0, %c0_i32, %c0_i32_0 : i32, i32, i32
  }
  func.func @transform_1(%arg0: i32, %arg1: i32) -> (i32, i32, i32) {
    %c0_i32 = arith.constant 0 : i32
    %c0_i32_0 = arith.constant 0 : i32
    %c0_i32_1 = arith.constant 0 : i32
    return %arg1, %c0_i32, %c0_i32_0 : i32, i32, i32
  }
  func.func @transform_2(%arg0: i32, %arg1: i32) -> (i32, i32, i32) {
    %c0_i32 = arith.constant 0 : i32
    %c0_i32_0 = arith.constant 0 : i32
    %c0_i32_1 = arith.constant 0 : i32
    return %arg1, %c0_i32, %c0_i32_0 : i32, i32, i32
  }
  func.func @transform_3(%arg0: i32, %arg1: i32) -> (i32, i32, i32) {
    %c0_i32 = arith.constant 0 : i32
    %c0_i32_0 = arith.constant 0 : i32
    %c0_i32_1 = arith.constant 0 : i32
    return %arg1, %c0_i32, %c0_i32_0 : i32, i32, i32
  }
  func.func @transform_4(%arg0: i32, %arg1: i32) -> (i32, i32, i32) {
    %c0_i32 = arith.constant 0 : i32
    %c0_i32_0 = arith.constant 0 : i32
    %c0_i32_1 = arith.constant 0 : i32
    return %arg1, %c0_i32, %c0_i32_0 : i32, i32, i32
  }
  func.func @transform_5(%arg0: i32, %arg1: i32) -> (i32, i32, i32) {
    %c0_i32 = arith.constant 0 : i32
    %c0_i32_0 = arith.constant 0 : i32
    %c0_i32_1 = arith.constant 0 : i32
    return %arg1, %c0_i32, %c0_i32_0 : i32, i32, i32
  }
  func.func @transform_6(%arg0: i32, %arg1: i32) -> (i32, i32, i32) {
    %c0_i32 = arith.constant 0 : i32
    %c0_i32_0 = arith.constant 0 : i32
    %c0_i32_1 = arith.constant 0 : i32
    return %arg1, %c0_i32, %c0_i32_0 : i32, i32, i32
  }
  func.func @transform_7(%arg0: i32, %arg1: i32) -> (i32, i32, i32) {
    %c0_i32 = arith.constant 0 : i32
    %c0_i32_0 = arith.constant 0 : i32
    %c0_i32_1 = arith.constant 0 : i32
    return %arg1, %c0_i32, %c0_i32_0 : i32, i32, i32
  }
  func.func @transform_8(%arg0: i32, %arg1: i32) -> (i32, i32, i32) {
    %c0_i32 = arith.constant 0 : i32
    %c0_i32_0 = arith.constant 0 : i32
    %c0_i32_1 = arith.constant 0 : i32
    return %arg1, %c0_i32, %c0_i32_0 : i32, i32, i32
  }
  func.func @transform_9(%arg0: i32, %arg1: i32) -> (i32, i32, i32) {
    %c0_i32 = arith.constant 0 : i32
    %c0_i32_0 = arith.constant 0 : i32
    %c0_i32_1 = arith.constant 0 : i32
    return %arg1, %c0_i32, %c0_i32_0 : i32, i32, i32
  }
  func.func @transform_10(%arg0: i32, %arg1: i32) -> (i32, i32) {
    %c0_i32 = arith.constant 0 : i32
    %c0_i32_0 = arith.constant 0 : i32
    %c0_i32_1 = arith.constant 0 : i32
    return %c0_i32, %c0_i32_0 : i32, i32
  }
  func.func @transform_11(%arg0: i32, %arg1: i32) -> (i32, i32) {
    %c0_i32 = arith.constant 0 : i32
    %c0_i32_0 = arith.constant 0 : i32
    %c0_i32_1 = arith.constant 0 : i32
    return %c0_i32, %c0_i32_0 : i32, i32
  }
  func.func @transform_12(%arg0: i32, %arg1: i32) -> (i32, i32) {
    %c0_i32 = arith.constant 0 : i32
    %c0_i32_0 = arith.constant 0 : i32
    %c0_i32_1 = arith.constant 0 : i32
    return %c0_i32, %c0_i32_0 : i32, i32
  }
  func.func @transform_13(%arg0: i32, %arg1: i32) -> (i32, i32) {
    %c0_i32 = arith.constant 0 : i32
    %c0_i32_0 = arith.constant 0 : i32
    %c0_i32_1 = arith.constant 0 : i32
    return %c0_i32, %c0_i32_0 : i32, i32
  }
  func.func @transform_14(%arg0: i32, %arg1: i32) -> (i32, i32, i32) {
    %c0_i32 = arith.constant 0 : i32
    %c0_i32_0 = arith.constant 0 : i32
    %c0_i32_1 = arith.constant 0 : i32
    return %arg0, %c0_i32, %c0_i32_0 : i32, i32, i32
  }
}

</mosaic_0001>

<llo_original>
// kernel: transformer_forward.1
$region0: #{transformer_forward.1}
  #allocation0 [shape = 'u32[]', space=smem, size = 0x4, offset = 0x4, fixed_abs, tag = 'smem constant byte address 0x4 - core index']
  #allocation1 [shape = 'u32[144,128]{1,0:T(1,128)}', space=vmem, size = 0x12000, scoped, tag = 'internal scratch']
  #allocation2 [shape = 'f32[8,128]{1,0:T(8,128)}', space=vmem, size = 0x1000, scoped, tag = 'scratch operand']
  %s0 = inlined_call_operand.vmem [shape: f32[2,8,128], index: 0, kind: input, shape index: {}]
  %s1 = inlined_call_operand.hbm [shape: bf16[2,128,384], index: 1, kind: input, shape index: {}]
  %s2 = inlined_call_operand.hbm [shape: f32[2,1,384], index: 2, kind: input, shape index: {}]
  %s3 = inlined_call_operand.hbm [shape: bf16[2,128,128], index: 3, kind: input, shape index: {}]
  %s4 = inlined_call_operand.vmem [shape: f32[2,1,128], index: 4, kind: input, shape index: {}]
  %s5 = inlined_call_operand.hbm [shape: f32[2,4,128], index: 5, kind: input, shape index: {}]
  %s6 = inlined_call_operand.hbm [shape: bf16[2,128,128], index: 6, kind: input, shape index: {}]
  %s7 = inlined_call_operand.hbm [shape: f32[2,1,128], index: 7, kind: input, shape index: {}]
  %s8 = inlined_call_operand.hbm [shape: bf16[2,128,128], index: 8, kind: input, shape index: {}]
  %s9 = inlined_call_operand.hbm [shape: f32[2,1,128], index: 9, kind: input, shape index: {}]
  %s10 = inlined_call_operand.hbm [shape: bf16[128,128], index: 10, kind: input, shape index: {}]
  %s11 = inlined_call_operand.vmem [shape: f32[1,128], index: 11, kind: input, shape index: {}]
  %s12 = inlined_call_operand.vmem [shape: bf16[128,128], index: 12, kind: input, shape index: {}]
  %s13 = inlined_call_operand.hbm [shape: f32[1,128], index: 13, kind: input, shape index: {}]
  %s14 = inlined_call_operand.vmem [shape: f32[2,1,128], index: 14, kind: output, shape index: {}]
  %s15 = sld [smem:[#allocation0]]
  $region137: #{transformer_forward.1} parent=0
    _
  %s17 = ssub.s32 1, %s15
  %s18 = scalar_select 0, %s17, %s15
  $region1: #{transformer_forward.1} parent=0
    #allocation3 [shape = 'u8[196608]{0}', space=vmem, size = 0x30000, scoped, tag = 'input window, operand 1']
    #allocation4 [shape = 's32[2]{0}', space=sflag, size = 0x8, scoped, tag = 'scoped memory for transformer_forward.1']
    #allocation5 [shape = 'u8[3072]{0}', space=vmem, size = 0xc00, scoped, tag = 'input window, operand 2']
    #allocation6 [shape = 's32[2]{0}', space=sflag, size = 0x8, scoped, tag = 'scoped memory for transformer_forward.1']
    #allocation7 [shape = 'u8[65536]{0}', space=vmem, size = 0x10000, scoped, tag = 'input window, operand 3']
    #allocation8 [shape = 'u8[4096]{0}', space=vmem, size = 0x1000, scoped, tag = 'input window, operand 5']
    #allocation9 [shape = 's32[2]{0}', space=sflag, size = 0x8, scoped, tag = 'scoped memory for transformer_forward.1']
    #allocation10 [shape = 'u8[65536]{0}', space=vmem, size = 0x10000, scoped, tag = 'input window, operand 6']
    #allocation11 [shape = 'u8[1024]{0}', space=vmem, size = 0x400, scoped, tag = 'input window, operand 7']
    #allocation12 [shape = 's32[2]{0}', space=sflag, size = 0x8, scoped, tag = 'scoped memory for transformer_forward.1']
    #allocation13 [shape = 'u8[65536]{0}', space=vmem, size = 0x10000, scoped, tag = 'input window, operand 8']
    #allocation14 [shape = 'u8[1024]{0}', space=vmem, size = 0x400, scoped, tag = 'input window, operand 9']
    #allocation15 [shape = 's32[2]{0}', space=sflag, size = 0x8, scoped, tag = 'scoped memory for transformer_forward.1']
    #allocation16 [shape = 'u8[32768]{0}', space=vmem, size = 0x8000, scoped, tag = 'input window, operand 10, single buffered']
    #allocation17 [shape = 'u8[512]{0}', space=vmem, size = 0x400, scoped, tag = 'input window, operand 13, single buffered']
    #allocation18 [shape = 's32[1]{0}', space=sflag, size = 0x4, scoped, tag = 'scoped memory for transformer_forward.1']
    %19 = vsyncpa [#allocation4], 0
    %s20 = scalar_lea.sflag [#allocation4], 1
    %21 = vsyncpa %s20, 0
    %22 = vsyncpa [#allocation6], 0
    %s23 = scalar_lea.sflag [#allocation6], 1
    %24 = vsyncpa %s23, 0
    %25 = vsyncpa [#allocation9], 0
    %s26 = scalar_lea.sflag [#allocation9], 1
    %27 = vsyncpa %s26, 0
    %28 = vsyncpa [#allocation12], 0
    %s29 = scalar_lea.sflag [#allocation12], 1
    %30 = vsyncpa %s29, 0
    %31 = vsyncpa [#allocation15], 0
    %s32 = scalar_lea.sflag [#allocation15], 1
    %33 = vsyncpa %s32, 0
    %34 = vsyncpa [#allocation18], 0
    loop: start=0, step=1, limit=6
    $region2: #{transformer_forward.1} parent=1 // loop_pre_header
      _
    $region3: #{transformer_forward.1} parent=1 // loop_header
      %s36 = sphi 0, %s40
      %p37 = scmp.ge.s32.totalorder %s36, 6
      %s43 = sphi 0, %s55
      %s44 = sphi 0, %s51
      %s45 = sphi 0, %s43
      %s46 = sphi 0, %s44
      %s47 = sphi 0, %s45
      %s48 = sphi 0, %s46
      %s58 = sphi 0, %s60
      %s61 = sphi 0, %s58
      %s62 = sphi 0, %s61
      %s78 = sphi 0, %s62
      %s84 = sphi 0, %s86
      %s87 = sphi 0, %s84
      %s88 = sphi 0, %s87
      %s104 = sphi 0, %s88
      %s110 = sphi 0, %s112
      %s113 = sphi 0, %s110
      %s114 = sphi 0, %s113
      %s130 = sphi 0, %s114
      %s136 = sphi 0, %s138
      %s139 = sphi 0, %s136
      %s140 = sphi 0, %s139
      %s156 = sphi 0, %s140
      %s162 = sphi 0, %s164
      %s165 = sphi 0, %s162
      %s166 = sphi 0, %s165
      %s182 = sphi 0, %s166
      %s188 = sphi 0, %s190
      %s191 = sphi 0, %s188
      %s192 = sphi 0, %s191
      %s208 = sphi 0, %s192
      %s214 = sphi 0, %s216
      %s217 = sphi 0, %s214
      %s218 = sphi 0, %s217
      %s234 = sphi 0, %s218
      %s240 = sphi 0, %s242
      %s243 = sphi 0, %s240
      %s244 = sphi 0, %s243
      %s260 = sphi 0, %s244
      %s266 = sphi 0, %s268
      %s269 = sphi 0, %s266
      %s270 = sphi 0, %s269
      %s286 = sphi 0, %s270
      %s292 = sphi 0, %s294
      %s295 = sphi 0, %s292
      %s296 = sphi 0, %s295
      %s312 = sphi 0, %s296
      %s316 = sphi 0, %s316
      %s318 = sphi 0, %s316
      %s319 = sphi 0, %s318
      %s333 = sphi 0, %s319
      %s337 = sphi 0, %s337
      %s339 = sphi 0, %s337
      %s340 = sphi 0, %s339
      %s354 = sphi 0, %s340
      %s358 = sphi 0, %s358
      %s360 = sphi 0, %s358
      %s361 = sphi 0, %s360
      %s375 = sphi 0, %s361
      %s379 = sphi 0, %s379
      %s381 = sphi 0, %s379
      %s382 = sphi 0, %s381
      %s396 = sphi 0, %s382
      %s402 = sphi 0, %s404
      %s405 = sphi 0, %s402
      %s406 = sphi 0, %s405
      %s422 = sphi 0, %s406
    $region4: #{transformer_forward.1} parent=1 // loop_header_branch
      %39 = sbr.rel (%p37) target = $region8
    $region5: #{transformer_forward.1} parent=1 // loop_body
      %s41 = ssub.s32 %s36, 1
      %s42 = ssub.s32 %s36, 2
      %s49 = sadd.s32 1, %s44
      %p50 = scmp.ge.s32.totalorder %s49, 2
      %s51 = scalar_select %p50, 0, %s49
      %s52 = sadd.s32 1, %s43
      %s53 = scalar_select %p50, %s52, %s43
      %p54 = scmp.ge.s32.totalorder %s53, 2
      %s55 = scalar_select %p54, 0, %s53
      %s56 = ssub.s32 %s43, %s55
      %p57 = scmp.eq.s32.totalorder %s56, 0
      %s59 = sadd.s32 %s58, 1
      %s60 = scalar_select %p57, %s58, %s59
      %p63 = pneg %p57
      %p64 = scmp.eq.s32.totalorder %s36, 3
      %p65 = por %p63, %p64
      %p66 = scmp.ne.s32.totalorder %s58, %s61
      %p67 = scmp.eq.s32.totalorder %s36, 0
      %p68 = por %p66, %p67
      %p69 = scmp.ne.s32.totalorder %s58, %s61
      %p70 = scmp.eq.s32.totalorder %s41, 3
      %p71 = por %p69, %p70
      %p72 = scmp.ne.s32.totalorder %s61, %s62
      %p73 = scmp.eq.s32.totalorder %s41, 0
      %p74 = por %p72, %p73
      %p75 = scmp.ne.s32.totalorder %s61, %s62
      %p76 = scmp.eq.s32.totalorder %s42, 3
      %p77 = por %p75, %p76
      %p79 = scmp.ne.s32.totalorder %s62, %s78
      %p80 = scmp.eq.s32.totalorder %s42, 0
      %p81 = por %p79, %p80
      %s82 = ssub.s32 %s44, %s51
      %p83 = scmp.eq.s32.totalorder %s82, 0
      %s85 = sadd.s32 %s84, 1
      %s86 = scalar_select %p83, %s84, %s85
      %p89 = pneg %p83
      %p90 = scmp.eq.s32.totalorder %s36, 3
      %p91 = por %p89, %p90
      %p92 = scmp.ne.s32.totalorder %s84, %s87
      %p93 = scmp.eq.s32.totalorder %s36, 0
      %p94 = por %p92, %p93
      %p95 = scmp.ne.s32.totalorder %s84, %s87
      %p96 = scmp.eq.s32.totalorder %s41, 3
      %p97 = por %p95, %p96
      %p98 = scmp.ne.s32.totalorder %s87, %s88
      %p99 = scmp.eq.s32.totalorder %s41, 0
      %p100 = por %p98, %p99
      %p101 = scmp.ne.s32.totalorder %s87, %s88
      %p102 = scmp.eq.s32.totalorder %s42, 3
      %p103 = por %p101, %p102
      %p105 = scmp.ne.s32.totalorder %s88, %s104
      %p106 = scmp.eq.s32.totalorder %s42, 0
      %p107 = por %p105, %p106
      %s108 = ssub.s32 %s44, %s51
      %p109 = scmp.eq.s32.totalorder %s108, 0
      %s111 = sadd.s32 %s110, 1
      %s112 = scalar_select %p109, %s110, %s111
      %p115 = pneg %p109
      %p116 = scmp.eq.s32.totalorder %s36, 3
      %p117 = por %p115, %p116
      %p118 = scmp.ne.s32.totalorder %s110, %s113
      %p119 = scmp.eq.s32.totalorder %s36, 0
      %p120 = por %p118, %p119
      %p121 = scmp.ne.s32.totalorder %s110, %s113
      %p122 = scmp.eq.s32.totalorder %s41, 3
      %p123 = por %p121, %p122
      %p124 = scmp.ne.s32.totalorder %s113, %s114
      %p125 = scmp.eq.s32.totalorder %s41, 0
      %p126 = por %p124, %p125
      %p127 = scmp.ne.s32.totalorder %s113, %s114
      %p128 = scmp.eq.s32.totalorder %s42, 3
      %p129 = por %p127, %p128
      %p131 = scmp.ne.s32.totalorder %s114, %s130
      %p132 = scmp.eq.s32.totalorder %s42, 0
      %p133 = por %p131, %p132
      %s134 = ssub.s32 %s44, %s51
      %p135 = scmp.eq.s32.totalorder %s134, 0
      %s137 = sadd.s32 %s136, 1
      %s138 = scalar_select %p135, %s136, %s137
      %p141 = pneg %p135
      %p142 = scmp.eq.s32.totalorder %s36, 3
      %p143 = por %p141, %p142
      %p144 = scmp.ne.s32.totalorder %s136, %s139
      %p145 = scmp.eq.s32.totalorder %s36, 0
      %p146 = por %p144, %p145
      %p147 = scmp.ne.s32.totalorder %s136, %s139
      %p148 = scmp.eq.s32.totalorder %s41, 3
      %p149 = por %p147, %p148
      %p150 = scmp.ne.s32.totalorder %s139, %s140
      %p151 = scmp.eq.s32.totalorder %s41, 0
      %p152 = por %p150, %p151
      %p153 = scmp.ne.s32.totalorder %s139, %s140
      %p154 = scmp.eq.s32.totalorder %s42, 3
      %p155 = por %p153, %p154
      %p157 = scmp.ne.s32.totalorder %s140, %s156
      %p158 = scmp.eq.s32.totalorder %s42, 0
      %p159 = por %p157, %p158
      %s160 = ssub.s32 %s44, %s51
      %p161 = scmp.eq.s32.totalorder %s160, 0
      %s163 = sadd.s32 %s162, 1
      %s164 = scalar_select %p161, %s162, %s163
      %p167 = pneg %p161
      %p168 = scmp.eq.s32.totalorder %s36, 3
      %p169 = por %p167, %p168
      %p170 = scmp.ne.s32.totalorder %s162, %s165
      %p171 = scmp.eq.s32.totalorder %s36, 0
      %p172 = por %p170, %p171
      %p173 = scmp.ne.s32.totalorder %s162, %s165
      %p174 = scmp.eq.s32.totalorder %s41, 3
      %p175 = por %p173, %p174
      %p176 = scmp.ne.s32.totalorder %s165, %s166
      %p177 = scmp.eq.s32.totalorder %s41, 0
      %p178 = por %p176, %p177
      %p179 = scmp.ne.s32.totalorder %s165, %s166
      %p180 = scmp.eq.s32.totalorder %s42, 3
      %p181 = por %p179, %p180
      %p183 = scmp.ne.s32.totalorder %s166, %s182
      %p184 = scmp.eq.s32.totalorder %s42, 0
      %p185 = por %p183, %p184
      %s186 = ssub.s32 %s44, %s51
      %p187 = scmp.eq.s32.totalorder %s186, 0
      %s189 = sadd.s32 %s188, 1
      %s190 = scalar_select %p187, %s188, %s189
      %p193 = pneg %p187
      %p194 = scmp.eq.s32.totalorder %s36, 3
      %p195 = por %p193, %p194
      %p196 = scmp.ne.s32.totalorder %s188, %s191
      %p197 = scmp.eq.s32.totalorder %s36, 0
      %p198 = por %p196, %p197
      %p199 = scmp.ne.s32.totalorder %s188, %s191
      %p200 = scmp.eq.s32.totalorder %s41, 3
      %p201 = por %p199, %p200
      %p202 = scmp.ne.s32.totalorder %s191, %s192
      %p203 = scmp.eq.s32.totalorder %s41, 0
      %p204 = por %p202, %p203
      %p205 = scmp.ne.s32.totalorder %s191, %s192
      %p206 = scmp.eq.s32.totalorder %s42, 3
      %p207 = por %p205, %p206
      %p209 = scmp.ne.s32.totalorder %s192, %s208
      %p210 = scmp.eq.s32.totalorder %s42, 0
      %p211 = por %p209, %p210
      %s212 = ssub.s32 %s44, %s51
      %p213 = scmp.eq.s32.totalorder %s212, 0
      %s215 = sadd.s32 %s214, 1
      %s216 = scalar_select %p213, %s214, %s215
      %p219 = pneg %p213
      %p220 = scmp.eq.s32.totalorder %s36, 3
      %p221 = por %p219, %p220
      %p222 = scmp.ne.s32.totalorder %s214, %s217
      %p223 = scmp.eq.s32.totalorder %s36, 0
      %p224 = por %p222, %p223
      %p225 = scmp.ne.s32.totalorder %s214, %s217
      %p226 = scmp.eq.s32.totalorder %s41, 3
      %p227 = por %p225, %p226
      %p228 = scmp.ne.s32.totalorder %s217, %s218
      %p229 = scmp.eq.s32.totalorder %s41, 0
      %p230 = por %p228, %p229
      %p231 = scmp.ne.s32.totalorder %s217, %s218
      %p232 = scmp.eq.s32.totalorder %s42, 3
      %p233 = por %p231, %p232
      %p235 = scmp.ne.s32.totalorder %s218, %s234
      %p236 = scmp.eq.s32.totalorder %s42, 0
      %p237 = por %p235, %p236
      %s238 = ssub.s32 %s44, %s51
      %p239 = scmp.eq.s32.totalorder %s238, 0
      %s241 = sadd.s32 %s240, 1
      %s242 = scalar_select %p239, %s240, %s241
      %p245 = pneg %p239
      %p246 = scmp.eq.s32.totalorder %s36, 3
      %p247 = por %p245, %p246
      %p248 = scmp.ne.s32.totalorder %s240, %s243
      %p249 = scmp.eq.s32.totalorder %s36, 0
      %p250 = por %p248, %p249
      %p251 = scmp.ne.s32.totalorder %s240, %s243
      %p252 = scmp.eq.s32.totalorder %s41, 3
      %p253 = por %p251, %p252
      %p254 = scmp.ne.s32.totalorder %s243, %s244
      %p255 = scmp.eq.s32.totalorder %s41, 0
      %p256 = por %p254, %p255
      %p257 = scmp.ne.s32.totalorder %s243, %s244
      %p258 = scmp.eq.s32.totalorder %s42, 3
      %p259 = por %p257, %p258
      %p261 = scmp.ne.s32.totalorder %s244, %s260
      %p262 = scmp.eq.s32.totalorder %s42, 0
      %p263 = por %p261, %p262
      %s264 = ssub.s32 %s44, %s51
      %p265 = scmp.eq.s32.totalorder %s264, 0
      %s267 = sadd.s32 %s266, 1
      %s268 = scalar_select %p265, %s266, %s267
      %p271 = pneg %p265
      %p272 = scmp.eq.s32.totalorder %s36, 3
      %p273 = por %p271, %p272
      %p274 = scmp.ne.s32.totalorder %s266, %s269
      %p275 = scmp.eq.s32.totalorder %s36, 0
      %p276 = por %p274, %p275
      %p277 = scmp.ne.s32.totalorder %s266, %s269
      %p278 = scmp.eq.s32.totalorder %s41, 3
      %p279 = por %p277, %p278
      %p280 = scmp.ne.s32.totalorder %s269, %s270
      %p281 = scmp.eq.s32.totalorder %s41, 0
      %p282 = por %p280, %p281
      %p283 = scmp.ne.s32.totalorder %s269, %s270
      %p284 = scmp.eq.s32.totalorder %s42, 3
      %p285 = por %p283, %p284
      %p287 = scmp.ne.s32.totalorder %s270, %s286
      %p288 = scmp.eq.s32.totalorder %s42, 0
      %p289 = por %p287, %p288
      %s290 = ssub.s32 %s44, %s51
      %p291 = scmp.eq.s32.totalorder %s290, 0
      %s293 = sadd.s32 %s292, 1
      %s294 = scalar_select %p291, %s292, %s293
      %p297 = pneg %p291
      %p298 = scmp.eq.s32.totalorder %s36, 3
      %p299 = por %p297, %p298
      %p300 = scmp.ne.s32.totalorder %s292, %s295
      %p301 = scmp.eq.s32.totalorder %s36, 0
      %p302 = por %p300, %p301
      %p303 = scmp.ne.s32.totalorder %s292, %s295
      %p304 = scmp.eq.s32.totalorder %s41, 3
      %p305 = por %p303, %p304
      %p306 = scmp.ne.s32.totalorder %s295, %s296
      %p307 = scmp.eq.s32.totalorder %s41, 0
      %p308 = por %p306, %p307
      %p309 = scmp.ne.s32.totalorder %s295, %s296
      %p310 = scmp.eq.s32.totalorder %s42, 3
      %p311 = por %p309, %p310
      %p313 = scmp.ne.s32.totalorder %s296, %s312
      %p314 = scmp.eq.s32.totalorder %s42, 0
      %p315 = por %p313, %p314
      %s317 = sadd.s32 %s316, 1
      %p320 = scmp.eq.s32.totalorder %s36, 3
      %p321 = scmp.ne.s32.totalorder %s316, %s318
      %p322 = scmp.eq.s32.totalorder %s36, 0
      %p323 = por %p321, %p322
      %p324 = scmp.ne.s32.totalorder %s316, %s318
      %p325 = scmp.eq.s32.totalorder %s41, 3
      %p326 = por %p324, %p325
      %p327 = scmp.ne.s32.totalorder %s318, %s319
      %p328 = scmp.eq.s32.totalorder %s41, 0
      %p329 = por %p327, %p328
      %p330 = scmp.ne.s32.totalorder %s318, %s319
      %p331 = scmp.eq.s32.totalorder %s42, 3
      %p332 = por %p330, %p331
      %p334 = scmp.ne.s32.totalorder %s319, %s333
      %p335 = scmp.eq.s32.totalorder %s42, 0
      %p336 = por %p334, %p335
      %s338 = sadd.s32 %s337, 1
      %p341 = scmp.eq.s32.totalorder %s36, 3
      %p342 = scmp.ne.s32.totalorder %s337, %s339
      %p343 = scmp.eq.s32.totalorder %s36, 0
      %p344 = por %p342, %p343
      %p345 = scmp.ne.s32.totalorder %s337, %s339
      %p346 = scmp.eq.s32.totalorder %s41, 3
      %p347 = por %p345, %p346
      %p348 = scmp.ne.s32.totalorder %s339, %s340
      %p349 = scmp.eq.s32.totalorder %s41, 0
      %p350 = por %p348, %p349
      %p351 = scmp.ne.s32.totalorder %s339, %s340
      %p352 = scmp.eq.s32.totalorder %s42, 3
      %p353 = por %p351, %p352
      %p355 = scmp.ne.s32.totalorder %s340, %s354
      %p356 = scmp.eq.s32.totalorder %s42, 0
      %p357 = por %p355, %p356
      %s359 = sadd.s32 %s358, 1
      %p362 = scmp.eq.s32.totalorder %s36, 3
      %p363 = scmp.ne.s32.totalorder %s358, %s360
      %p364 = scmp.eq.s32.totalorder %s36, 0
      %p365 = por %p363, %p364
      %p366 = scmp.ne.s32.totalorder %s358, %s360
      %p367 = scmp.eq.s32.totalorder %s41, 3
      %p368 = por %p366, %p367
      %p369 = scmp.ne.s32.totalorder %s360, %s361
      %p370 = scmp.eq.s32.totalorder %s41, 0
      %p371 = por %p369, %p370
      %p372 = scmp.ne.s32.totalorder %s360, %s361
      %p373 = scmp.eq.s32.totalorder %s42, 3
      %p374 = por %p372, %p373
      %p376 = scmp.ne.s32.totalorder %s361, %s375
      %p377 = scmp.eq.s32.totalorder %s42, 0
      %p378 = por %p376, %p377
      %s380 = sadd.s32 %s379, 1
      %p383 = scmp.eq.s32.totalorder %s36, 3
      %p384 = scmp.ne.s32.totalorder %s379, %s381
      %p385 = scmp.eq.s32.totalorder %s36, 0
      %p386 = por %p384, %p385
      %p387 = scmp.ne.s32.totalorder %s379, %s381
      %p388 = scmp.eq.s32.totalorder %s41, 3
      %p389 = por %p387, %p388
      %p390 = scmp.ne.s32.totalorder %s381, %s382
      %p391 = scmp.eq.s32.totalorder %s41, 0
      %p392 = por %p390, %p391
      %p393 = scmp.ne.s32.totalorder %s381, %s382
      %p394 = scmp.eq.s32.totalorder %s42, 3
      %p395 = por %p393, %p394
      %p397 = scmp.ne.s32.totalorder %s382, %s396
      %p398 = scmp.eq.s32.totalorder %s42, 0
      %p399 = por %p397, %p398
      %s400 = ssub.s32 %s43, %s55
      %p401 = scmp.eq.s32.totalorder %s400, 0
      %s403 = sadd.s32 %s402, 1
      %s404 = scalar_select %p401, %s402, %s403
      %p407 = pneg %p401
      %p408 = scmp.eq.s32.totalorder %s36, 3
      %p409 = por %p407, %p408
      %p410 = scmp.ne.s32.totalorder %s402, %s405
      %p411 = scmp.eq.s32.totalorder %s36, 0
      %p412 = por %p410, %p411
      %p413 = scmp.ne.s32.totalorder %s402, %s405
      %p414 = scmp.eq.s32.totalorder %s41, 3
      %p415 = por %p413, %p414
      %p416 = scmp.ne.s32.totalorder %s405, %s406
      %p417 = scmp.eq.s32.totalorder %s41, 0
      %p418 = por %p416, %p417
      %p419 = scmp.ne.s32.totalorder %s405, %s406
      %p420 = scmp.eq.s32.totalorder %s42, 3
      %p421 = por %p419, %p420
      %p423 = scmp.ne.s32.totalorder %s406, %s422
      %p424 = scmp.eq.s32.totalorder %s42, 0
      %p425 = por %p423, %p424
      %p426 = scmp.le.s32.totalorder 1, %s36
      %p427 = scmp.lt.s32.totalorder %s36, 5
      %p428 = pnand %p426, %p427
      %p429 = pneg %p428
      // Predicated region
      $region9: #{transformer_forward.1} parent=5 // pred_check
        _
      $region10: #{transformer_forward.1} parent=5 // pred_check_branch
        %431 = sbr.rel (%p428) target = $region12
      $region11: #{transformer_forward.1} parent=5 // pred_region
        %s432 = ssub.s32 %s36, 1
        // Predicated region
        $region13: #{transformer_forward.1} parent=11 // pred_check
          %p433 = pneg %p329
        $region14: #{transformer_forward.1} parent=11 // pred_check_branch
          %435 = sbr.rel (%p433) target = $region16
        $region15: #{transformer_forward.1} parent=11 // pred_region
          %s437 = ssub.s32 1024, 1024
          %438 = vsyncadd [#allocation15], %s437
          %s439 = sshll.u32 [#allocation16], 4
          %s440 = int_to_ptr.vmem [resolvable:$true] %s439
          %445 = dma.hbm_to_vmem [thread:$0]  %s10, 1024, %s440, [#allocation15], 64, 64, 4
        $region16: #{transformer_forward.1} parent=11 // pred_fallthru
          _
        // Predicated region
        $region17: #{transformer_forward.1} parent=11 // pred_check
          %p446 = pneg %p350
        $region18: #{transformer_forward.1} parent=11 // pred_check_branch
          %448 = sbr.rel (%p446) target = $region20
        $region19: #{transformer_forward.1} parent=11 // pred_region
          _
        $region20: #{transformer_forward.1} parent=11 // pred_fallthru
          _
        // Predicated region
        $region21: #{transformer_forward.1} parent=11 // pred_check
          %p449 = pneg %p371
        $region22: #{transformer_forward.1} parent=11 // pred_check_branch
          %451 = sbr.rel (%p449) target = $region24
        $region23: #{transformer_forward.1} parent=11 // pred_region
          _
        $region24: #{transformer_forward.1} parent=11 // pred_fallthru
          _
        // Predicated region
        $region25: #{transformer_forward.1} parent=11 // pred_check
          %p452 = pneg %p392
        $region26: #{transformer_forward.1} parent=11 // pred_check_branch
          %454 = sbr.rel (%p452) target = $region28
        $region27: #{transformer_forward.1} parent=11 // pred_region
          %s456 = ssub.s32 16, 16
          %457 = vsyncadd [#allocation18], %s456
          %s459 = sshll.u32 [#allocation17], 4
          %s460 = int_to_ptr.vmem [resolvable:$true] %s459
          %462 = dma.hbm_to_vmem [thread:$0]  %s13, 16, %s460, [#allocation18]
        $region28: #{transformer_forward.1} parent=11 // pred_fallthru
          _
      $region12: #{transformer_forward.1} parent=5 // pred_fallthru
        _
      %p463 = scmp.lt.s32.totalorder %s36, 4
      // Predicated region
      $region29: #{transformer_forward.1} parent=5 // pred_check
        %p464 = pneg %p463
      $region30: #{transformer_forward.1} parent=5 // pred_check_branch
        %466 = sbr.rel (%p464) target = $region32
      $region31: #{transformer_forward.1} parent=5 // pred_region
        // Predicated region
        $region33: #{transformer_forward.1} parent=31 // pred_check
          %p467 = pneg %p68
        $region34: #{transformer_forward.1} parent=31 // pred_check_branch
          %469 = sbr.rel (%p467) target = $region36
        $region35: #{transformer_forward.1} parent=31 // pred_region
          %p470 = scmp.lt.s32.totalorder %s43, 1
          %s471 = scalar_select %p470, %s43, 1
          %s472 = smul.addr %s471, 8
          %s473 = scalar_lea.vmem %s0, %s472
        $region36: #{transformer_forward.1} parent=31 // pred_fallthru
          _
        // Predicated region
        $region37: #{transformer_forward.1} parent=31 // pred_check
          %p474 = pneg %p94
        $region38: #{transformer_forward.1} parent=31 // pred_check_branch
          %476 = sbr.rel (%p474) target = $region40
        $region39: #{transformer_forward.1} parent=31 // pred_region
          %s477 = sand.u32 %s84, 1
          %s478 = scalar_lea.sflag [#allocation4], %s477
          %s479 = sand.u32 %s84, 1
          %s480 = smul.addr %s479, 192
          %s481 = scalar_lea.vmem [#allocation3], %s480
          %s483 = ssub.s32 3072, 3072
          %484 = vsyncadd %s478, %s483
          %s485 = smul.addr %s44, 48
          %s486 = smul.addr %s485, 64
          %s487 = scalar_lea.hbm %s1, %s486
          %s488 = sshll.u32 %s481, 4
          %s489 = int_to_ptr.vmem [resolvable:$true] %s488
          %494 = dma.hbm_to_vmem [thread:$0]  %s487, 3072, %s489, %s478, 192, 192, 12
        $region40: #{transformer_forward.1} parent=31 // pred_fallthru
          _
        // Predicated region
        $region41: #{transformer_forward.1} parent=31 // pred_check
          %p495 = pneg %p120
        $region42: #{transformer_forward.1} parent=31 // pred_check_branch
          %497 = sbr.rel (%p495) target = $region44
        $region43: #{transformer_forward.1} parent=31 // pred_region
          %s498 = sand.u32 %s36, 1
          %s499 = scalar_lea.sflag [#allocation6], %s498
          %s500 = sand.u32 %s110, 1
          %s501 = smul.addr %s500, 3
          %s502 = scalar_lea.vmem [#allocation5], %s501
          %s504 = ssub.s32 48, 48
          %505 = vsyncadd %s499, %s504
          %s506 = smul.addr %s44, 3
          %s507 = smul.addr %s506, 16
          %s508 = scalar_lea.hbm %s2, %s507
          %s510 = sshll.u32 %s502, 4
          %s511 = int_to_ptr.vmem [resolvable:$true] %s510
          %513 = dma.hbm_to_vmem [thread:$0]  %s508, 48, %s511, %s499
        $region44: #{transformer_forward.1} parent=31 // pred_fallthru
          _
        // Predicated region
        $region45: #{transformer_forward.1} parent=31 // pred_check
          %p514 = pneg %p146
        $region46: #{transformer_forward.1} parent=31 // pred_check_branch
          %516 = sbr.rel (%p514) target = $region48
        $region47: #{transformer_forward.1} parent=31 // pred_region
          %s517 = sand.u32 %s36, 1
          %s518 = scalar_lea.sflag [#allocation6], %s517
          %s519 = sand.u32 %s136, 1
          %s520 = smul.addr %s519, 64
          %s521 = scalar_lea.vmem [#allocation7], %s520
          %s523 = ssub.s32 1024, 1024
          %524 = vsyncadd %s518, %s523
          %s525 = smul.addr %s44, 16
          %s526 = smul.addr %s525, 64
          %s527 = scalar_lea.hbm %s3, %s526
          %s528 = sshll.u32 %s521, 4
          %s529 = int_to_ptr.vmem [resolvable:$true] %s528
          %534 = dma.hbm_to_vmem [thread:$0]  %s527, 1024, %s529, %s518, 64, 64, 4
        $region48: #{transformer_forward.1} parent=31 // pred_fallthru
          _
        // Predicated region
        $region49: #{transformer_forward.1} parent=31 // pred_check
          %p535 = pneg %p172
        $region50: #{transformer_forward.1} parent=31 // pred_check_branch
          %537 = sbr.rel (%p535) target = $region52
        $region51: #{transformer_forward.1} parent=31 // pred_region
          %p538 = scmp.lt.s32.totalorder %s44, 1
          %s539 = scalar_select %p538, %s44, 1
          %s540 = scalar_lea.vmem %s4, %s539
        $region52: #{transformer_forward.1} parent=31 // pred_fallthru
          _
        // Predicated region
        $region53: #{transformer_forward.1} parent=31 // pred_check
          %p541 = pneg %p198
        $region54: #{transformer_forward.1} parent=31 // pred_check_branch
          %543 = sbr.rel (%p541) target = $region56
        $region55: #{transformer_forward.1} parent=31 // pred_region
          %s544 = sand.u32 %s36, 1
          %s545 = scalar_lea.sflag [#allocation9], %s544
          %s546 = sand.u32 %s188, 1
          %s547 = smul.addr %s546, 4
          %s548 = scalar_lea.vmem [#allocation8], %s547
          %s550 = ssub.s32 64, 64
          %551 = vsyncadd %s545, %s550
          %s552 = smul.addr %s44, 64
          %s553 = scalar_lea.hbm %s5, %s552
          %s555 = sshll.u32 %s548, 4
          %s556 = int_to_ptr.vmem [resolvable:$true] %s555
          %558 = dma.hbm_to_vmem [thread:$0]  %s553, 64, %s556, %s545
        $region56: #{transformer_forward.1} parent=31 // pred_fallthru
          _
        // Predicated region
        $region57: #{transformer_forward.1} parent=31 // pred_check
          %p559 = pneg %p224
        $region58: #{transformer_forward.1} parent=31 // pred_check_branch
          %561 = sbr.rel (%p559) target = $region60
        $region59: #{transformer_forward.1} parent=31 // pred_region
          %s562 = sand.u32 %s36, 1
          %s563 = scalar_lea.sflag [#allocation9], %s562
          %s564 = sand.u32 %s214, 1
          %s565 = smul.addr %s564, 64
          %s566 = scalar_lea.vmem [#allocation10], %s565
          %s568 = ssub.s32 1024, 1024
          %569 = vsyncadd %s563, %s568
          %s570 = smul.addr %s44, 16
          %s571 = smul.addr %s570, 64
          %s572 = scalar_lea.hbm %s6, %s571
          %s573 = sshll.u32 %s566, 4
          %s574 = int_to_ptr.vmem [resolvable:$true] %s573
          %579 = dma.hbm_to_vmem [thread:$0]  %s572, 1024, %s574, %s563, 64, 64, 4
        $region60: #{transformer_forward.1} parent=31 // pred_fallthru
          _
        // Predicated region
        $region61: #{transformer_forward.1} parent=31 // pred_check
          %p580 = pneg %p250
        $region62: #{transformer_forward.1} parent=31 // pred_check_branch
          %582 = sbr.rel (%p580) target = $region64
        $region63: #{transformer_forward.1} parent=31 // pred_region
          %s583 = sand.u32 %s36, 1
          %s584 = scalar_lea.sflag [#allocation12], %s583
          %s585 = sand.u32 %s240, 1
          %s586 = scalar_lea.vmem [#allocation11], %s585
          %s588 = ssub.s32 16, 16
          %589 = vsyncadd %s584, %s588
          %s590 = smul.addr %s44, 16
          %s591 = scalar_lea.hbm %s7, %s590
          %s593 = sshll.u32 %s586, 4
          %s594 = int_to_ptr.vmem [resolvable:$true] %s593
          %596 = dma.hbm_to_vmem [thread:$0]  %s591, 16, %s594, %s584
        $region64: #{transformer_forward.1} parent=31 // pred_fallthru
          _
        // Predicated region
        $region65: #{transformer_forward.1} parent=31 // pred_check
          %p597 = pneg %p276
        $region66: #{transformer_forward.1} parent=31 // pred_check_branch
          %599 = sbr.rel (%p597) target = $region68
        $region67: #{transformer_forward.1} parent=31 // pred_region
          %s600 = sand.u32 %s36, 1
          %s601 = scalar_lea.sflag [#allocation12], %s600
          %s602 = sand.u32 %s266, 1
          %s603 = smul.addr %s602, 64
          %s604 = scalar_lea.vmem [#allocation13], %s603
          %s606 = ssub.s32 1024, 1024
          %607 = vsyncadd %s601, %s606
          %s608 = smul.addr %s44, 16
          %s609 = smul.addr %s608, 64
          %s610 = scalar_lea.hbm %s8, %s609
          %s611 = sshll.u32 %s604, 4
          %s612 = int_to_ptr.vmem [resolvable:$true] %s611
          %617 = dma.hbm_to_vmem [thread:$0]  %s610, 1024, %s612, %s601, 64, 64, 4
        $region68: #{transformer_forward.1} parent=31 // pred_fallthru
          _
        // Predicated region
        $region69: #{transformer_forward.1} parent=31 // pred_check
          %p618 = pneg %p302
        $region70: #{transformer_forward.1} parent=31 // pred_check_branch
          %620 = sbr.rel (%p618) target = $region72
        $region71: #{transformer_forward.1} parent=31 // pred_region
          %s621 = sand.u32 %s36, 1
          %s622 = scalar_lea.sflag [#allocation15], %s621
          %s623 = sand.u32 %s292, 1
          %s624 = scalar_lea.vmem [#allocation14], %s623
          %s626 = ssub.s32 16, 16
          %627 = vsyncadd %s622, %s626
          %s628 = smul.addr %s44, 16
          %s629 = scalar_lea.hbm %s9, %s628
          %s631 = sshll.u32 %s624, 4
          %s632 = int_to_ptr.vmem [resolvable:$true] %s631
          %634 = dma.hbm_to_vmem [thread:$0]  %s629, 16, %s632, %s622
        $region72: #{transformer_forward.1} parent=31 // pred_fallthru
          _
      $region32: #{transformer_forward.1} parent=5 // pred_fallthru
        _
      %p635 = scmp.le.s32.totalorder 1, %s36
      %p636 = scmp.lt.s32.totalorder %s36, 5
      %p637 = pnand %p635, %p636
      %p638 = pneg %p637
      // Predicated region
      $region73: #{transformer_forward.1} parent=5 // pred_check
        _
      $region74: #{transformer_forward.1} parent=5 // pred_check_branch
        %640 = sbr.rel (%p637) target = $region76
      $region75: #{transformer_forward.1} parent=5 // pred_region
        %s641 = ssub.s32 %s36, 1
        %s642 = sand.u32 %s87, 1
        %s643 = scalar_lea.sflag [#allocation4], %s642
        %s644 = sand.u32 %s87, 1
        %s645 = smul.addr %s644, 192
        %s646 = scalar_lea.vmem [#allocation3], %s645
        // Predicated region
        $region77: #{transformer_forward.1} parent=75 // pred_check
          %p647 = pneg %p100
        $region78: #{transformer_forward.1} parent=75 // pred_check_branch
          %649 = sbr.rel (%p647) target = $region80
        $region79: #{transformer_forward.1} parent=75 // pred_region
          %650 = dma.done %s643, 3072
        $region80: #{transformer_forward.1} parent=75 // pred_fallthru
          _
        %s651 = sand.u32 %s41, 1
        %s652 = scalar_lea.sflag [#allocation6], %s651
        %s653 = sand.u32 %s113, 1
        %s654 = smul.addr %s653, 3
        %s655 = scalar_lea.vmem [#allocation5], %s654
        // Predicated region
        $region81: #{transformer_forward.1} parent=75 // pred_check
          %p656 = pneg %p126
        $region82: #{transformer_forward.1} parent=75 // pred_check_branch
          %658 = sbr.rel (%p656) target = $region84
        $region83: #{transformer_forward.1} parent=75 // pred_region
          %659 = dma.done %s652, 48
        $region84: #{transformer_forward.1} parent=75 // pred_fallthru
          _
        %s660 = sand.u32 %s41, 1
        %s661 = scalar_lea.sflag [#allocation6], %s660
        %s662 = sand.u32 %s139, 1
        %s663 = smul.addr %s662, 64
        %s664 = scalar_lea.vmem [#allocation7], %s663
        // Predicated region
        $region85: #{transformer_forward.1} parent=75 // pred_check
          %p665 = pneg %p152
        $region86: #{transformer_forward.1} parent=75 // pred_check_branch
          %667 = sbr.rel (%p665) target = $region88
        $region87: #{transformer_forward.1} parent=75 // pred_region
          %668 = dma.done %s661, 1024
        $region88: #{transformer_forward.1} parent=75 // pred_fallthru
          _
        %s669 = sand.u32 %s41, 1
        %s670 = scalar_lea.sflag [#allocation9], %s669
        %s671 = sand.u32 %s191, 1
        %s672 = smul.addr %s671, 4
        %s673 = scalar_lea.vmem [#allocation8], %s672
        // Predicated region
        $region89: #{transformer_forward.1} parent=75 // pred_check
          %p674 = pneg %p204
        $region90: #{transformer_forward.1} parent=75 // pred_check_branch
          %676 = sbr.rel (%p674) target = $region92
        $region91: #{transformer_forward.1} parent=75 // pred_region
          %677 = dma.done %s670, 64
        $region92: #{transformer_forward.1} parent=75 // pred_fallthru
          _
        %s678 = sand.u32 %s41, 1
        %s679 = scalar_lea.sflag [#allocation9], %s678
        %s680 = sand.u32 %s217, 1
        %s681 = smul.addr %s680, 64
        %s682 = scalar_lea.vmem [#allocation10], %s681
        // Predicated region
        $region93: #{transformer_forward.1} parent=75 // pred_check
          %p683 = pneg %p230
        $region94: #{transformer_forward.1} parent=75 // pred_check_branch
          %685 = sbr.rel (%p683) target = $region96
        $region95: #{transformer_forward.1} parent=75 // pred_region
          %686 = dma.done %s679, 1024
        $region96: #{transformer_forward.1} parent=75 // pred_fallthru
          _
        %s687 = sand.u32 %s41, 1
        %s688 = scalar_lea.sflag [#allocation12], %s687
        %s689 = sand.u32 %s243, 1
        %s690 = scalar_lea.vmem [#allocation11], %s689
        // Predicated region
        $region97: #{transformer_forward.1} parent=75 // pred_check
          %p691 = pneg %p256
        $region98: #{transformer_forward.1} parent=75 // pred_check_branch
          %693 = sbr.rel (%p691) target = $region100
        $region99: #{transformer_forward.1} parent=75 // pred_region
          %694 = dma.done %s688, 16
        $region100: #{transformer_forward.1} parent=75 // pred_fallthru
          _
        %s695 = sand.u32 %s41, 1
        %s696 = scalar_lea.sflag [#allocation12], %s695
        %s697 = sand.u32 %s269, 1
        %s698 = smul.addr %s697, 64
        %s699 = scalar_lea.vmem [#allocation13], %s698
        // Predicated region
        $region101: #{transformer_forward.1} parent=75 // pred_check
          %p700 = pneg %p282
        $region102: #{transformer_forward.1} parent=75 // pred_check_branch
          %702 = sbr.rel (%p700) target = $region104
        $region103: #{transformer_forward.1} parent=75 // pred_region
          %703 = dma.done %s696, 1024
        $region104: #{transformer_forward.1} parent=75 // pred_fallthru
          _
        %s704 = sand.u32 %s41, 1
        %s705 = scalar_lea.sflag [#allocation15], %s704
        %s706 = sand.u32 %s295, 1
        %s707 = scalar_lea.vmem [#allocation14], %s706
        // Predicated region
        $region105: #{transformer_forward.1} parent=75 // pred_check
          %p708 = pneg %p308
        $region106: #{transformer_forward.1} parent=75 // pred_check_branch
          %710 = sbr.rel (%p708) target = $region108
        $region107: #{transformer_forward.1} parent=75 // pred_region
          %711 = dma.done %s705, 16
        $region108: #{transformer_forward.1} parent=75 // pred_fallthru
          _
        // Predicated region
        $region109: #{transformer_forward.1} parent=75 // pred_check
          %p712 = pneg %p329
        $region110: #{transformer_forward.1} parent=75 // pred_check_branch
          %714 = sbr.rel (%p712) target = $region112
        $region111: #{transformer_forward.1} parent=75 // pred_region
          %715 = dma.done [#allocation15], 1024
        $region112: #{transformer_forward.1} parent=75 // pred_fallthru
          _
        // Predicated region
        $region113: #{transformer_forward.1} parent=75 // pred_check
          %p716 = pneg %p392
        $region114: #{transformer_forward.1} parent=75 // pred_check_branch
          %718 = sbr.rel (%p716) target = $region116
        $region115: #{transformer_forward.1} parent=75 // pred_region
          %719 = dma.done [#allocation18], 16
        $region116: #{transformer_forward.1} parent=75 // pred_fallthru
          _
        %p720 = scmp.lt.s32.totalorder %s45, 1
        %s721 = scalar_select %p720, %s45, 1
        %s722 = smul.addr %s721, 8
        %s723 = scalar_lea.vmem %s0, %s722
        %p724 = pneg %p74
        %p725 = pneg %p71
        %s726 = sand.u32 %s87, 1
        %s727 = scalar_lea.sflag [#allocation4], %s726
        %s728 = sand.u32 %s87, 1
        %s729 = smul.addr %s728, 192
        %s730 = scalar_lea.vmem [#allocation3], %s729
        %p731 = pneg %p100
        %p732 = pneg %p97
        %s733 = sand.u32 %s41, 1
        %s734 = scalar_lea.sflag [#allocation6], %s733
        %s735 = sand.u32 %s113, 1
        %s736 = smul.addr %s735, 3
        %s737 = scalar_lea.vmem [#allocation5], %s736
        %p738 = pneg %p126
        %p739 = pneg %p123
        %s740 = sand.u32 %s41, 1
        %s741 = scalar_lea.sflag [#allocation6], %s740
        %s742 = sand.u32 %s139, 1
        %s743 = smul.addr %s742, 64
        %s744 = scalar_lea.vmem [#allocation7], %s743
        %p745 = pneg %p152
        %p746 = pneg %p149
        %p747 = scmp.lt.s32.totalorder %s46, 1
        %s748 = scalar_select %p747, %s46, 1
        %s749 = scalar_lea.vmem %s4, %s748
        %p750 = pneg %p178
        %p751 = pneg %p175
        %s752 = sand.u32 %s41, 1
        %s753 = scalar_lea.sflag [#allocation9], %s752
        %s754 = sand.u32 %s191, 1
        %s755 = smul.addr %s754, 4
        %s756 = scalar_lea.vmem [#allocation8], %s755
        %p757 = pneg %p204
        %p758 = pneg %p201
        %s759 = sand.u32 %s41, 1
        %s760 = scalar_lea.sflag [#allocation9], %s759
        %s761 = sand.u32 %s217, 1
        %s762 = smul.addr %s761, 64
        %s763 = scalar_lea.vmem [#allocation10], %s762
        %p764 = pneg %p230
        %p765 = pneg %p227
        %s766 = sand.u32 %s41, 1
        %s767 = scalar_lea.sflag [#allocation12], %s766
        %s768 = sand.u32 %s243, 1
        %s769 = scalar_lea.vmem [#allocation11], %s768
        %p770 = pneg %p256
        %p771 = pneg %p253
        %s772 = sand.u32 %s41, 1
        %s773 = scalar_lea.sflag [#allocation12], %s772
        %s774 = sand.u32 %s269, 1
        %s775 = smul.addr %s774, 64
        %s776 = scalar_lea.vmem [#allocation13], %s775
        %p777 = pneg %p282
        %p778 = pneg %p279
        %s779 = sand.u32 %s41, 1
        %s780 = scalar_lea.sflag [#allocation15], %s779
        %s781 = sand.u32 %s295, 1
        %s782 = scalar_lea.vmem [#allocation14], %s781
        %p783 = pneg %p308
        %p784 = pneg %p305
        %p785 = pneg %p329
        %p786 = pneg %p326
        %p787 = pneg %p350
        %p788 = pneg %p347
        %p789 = pneg %p371
        %p790 = pneg %p368
        %p791 = pneg %p392
        %p792 = pneg %p389
        %p793 = pneg %p418
        %p794 = pneg %p415
        %p795 = scmp.lt.s32.totalorder %s45, 1
        %s796 = scalar_select %p795, %s45, 1
        %s797 = scalar_lea.vmem %s14, %s796
        %p798 = scmp.lt.s32.totalorder %s45, 1
        %s799 = scalar_select %p798, %s45, 1
        %s800 = smul.addr %s799, 8
        %s801 = scalar_lea.vmem %s0, %s800
        %p802 = scmp.lt.s32.totalorder %s46, 1
        %s803 = scalar_select %p802, %s46, 1
        %s804 = scalar_lea.vmem %s4, %s803
        %p805 = scmp.lt.s32.totalorder %s45, 1
        %s806 = scalar_select %p805, %s45, 1
        %s807 = scalar_lea.vmem %s14, %s806
        %p809 = scmp.eq.s32.totalorder %s46, 0
        // Predicated region
        $region117: #{transformer_forward.1} parent=75 // pred_check
          %p810 = pneg %p809
        $region118: #{transformer_forward.1} parent=75 // pred_check_branch
          %812 = sbr.rel (%p810) target = $region120
        $region119: #{transformer_forward.1} parent=75 // pred_region
          %v813 = vld [vmem:[%s801] sm:$0xff]
          %814 = vst [vmem:[#allocation2] sm:$0xff] %v813
        $region120: #{transformer_forward.1} parent=75 // pred_fallthru
          _
        %v815 = vld [vmem:[#allocation2] sm:$0xff]
        %v816 = vpack.c.bf16 %v815, %v815
        %v817 = vld [vmem:[%s646] sm:$0xff]
        %v818 = vld [vmem:[%s646 + $0x8] sm:$0xf]
        %v819 = vld [vmem:[%s646 + $0xc] sm:$0xff]
        %v820 = vld [vmem:[%s646 + $0x14] sm:$0xf]
        %v821 = vld [vmem:[%s646 + $0x18] sm:$0xff]
        %v822 = vld [vmem:[%s646 + $0x20] sm:$0xf]
        %v823 = vld [vmem:[%s646 + $0x24] sm:$0xff]
        %v824 = vld [vmem:[%s646 + $0x2c] sm:$0xf]
        %v825 = vld [vmem:[%s646 + $0x30] sm:$0xff]
        %v826 = vld [vmem:[%s646 + $0x38] sm:$0xf]
        %v827 = vld [vmem:[%s646 + $0x3c] sm:$0xff]
        %v828 = vld [vmem:[%s646 + $0x44] sm:$0xf]
        %v829 = vld [vmem:[%s646 + $0x48] sm:$0xff]
        %v830 = vld [vmem:[%s646 + $0x50] sm:$0xf]
        %v831 = vld [vmem:[%s646 + $0x54] sm:$0xff]
        %v832 = vld [vmem:[%s646 + $0x5c] sm:$0xf]
        %v833 = vld [vmem:[%s646 + $0x60] sm:$0xff]
        %v834 = vld [vmem:[%s646 + $0x68] sm:$0xf]
        %v835 = vld [vmem:[%s646 + $0x6c] sm:$0xff]
        %v836 = vld [vmem:[%s646 + $0x74] sm:$0xf]
        %v837 = vld [vmem:[%s646 + $0x78] sm:$0xff]
        %v838 = vld [vmem:[%s646 + $0x80] sm:$0xf]
        %v839 = vld [vmem:[%s646 + $0x84] sm:$0xff]
        %v840 = vld [vmem:[%s646 + $0x8c] sm:$0xf]
        %v841 = vld [vmem:[%s646 + $0x90] sm:$0xff]
        %v842 = vld [vmem:[%s646 + $0x98] sm:$0xf]
        %v843 = vld [vmem:[%s646 + $0x9c] sm:$0xff]
        %v844 = vld [vmem:[%s646 + $0xa4] sm:$0xf]
        %v845 = vld [vmem:[%s646 + $0xa8] sm:$0xff]
        %v846 = vld [vmem:[%s646 + $0xb0] sm:$0xf]
        %v847 = vld [vmem:[%s646 + $0xb4] sm:$0xff]
        %v848 = vld [vmem:[%s646 + $0xbc] sm:$0xf]
        %v849 = vld [vmem:[%s655] sm:$0x7]
        %v851 = vlaneseq
        %v852 = vshrl.u32 %v851, 7
        %v853 = vsub.s32 0, %v852
        %v854 = vrot.slane %v849, %v853
        %v855 = vlaneseq
        %v856 = vshrl.u32 %v855, 7
        %v857 = vsub.s32 1, %v856
        %v858 = vrot.slane %v849, %v857
        %v859 = vlaneseq
        %v860 = vshrl.u32 %v859, 7
        %v861 = vsub.s32 2, %v860
        %v862 = vrot.slane %v849, %v861
        %v898 = vunpack.c.l.b16 %v817
        %v899 = vunpack.c.h.b16 %v817
        %v900 = vunpack.c.l.b16 %v818
        %v901 = vunpack.c.l.b16 %v819
        %v902 = vunpack.c.h.b16 %v819
        %v903 = vunpack.c.l.b16 %v820
        %v904 = vunpack.c.l.b16 %v821
        %v905 = vunpack.c.h.b16 %v821
        %v906 = vunpack.c.l.b16 %v822
        %v907 = vunpack.c.l.b16 %v823
        %v908 = vunpack.c.h.b16 %v823
        %v909 = vunpack.c.l.b16 %v824
        %v910 = vunpack.c.l.b16 %v825
        %v911 = vunpack.c.h.b16 %v825
        %v912 = vunpack.c.l.b16 %v826
        %v913 = vunpack.c.l.b16 %v827
        %v914 = vunpack.c.h.b16 %v827
        %v915 = vunpack.c.l.b16 %v828
        %v916 = vunpack.c.l.b16 %v829
        %v917 = vunpack.c.h.b16 %v829
        %v918 = vunpack.c.l.b16 %v830
        %v919 = vunpack.c.l.b16 %v831
        %v920 = vunpack.c.h.b16 %v831
        %v921 = vunpack.c.l.b16 %v832
        %v922 = vunpack.c.l.b16 %v833
        %v923 = vunpack.c.h.b16 %v833
        %v924 = vunpack.c.l.b16 %v834
        %v925 = vunpack.c.l.b16 %v835
        %v926 = vunpack.c.h.b16 %v835
        %v927 = vunpack.c.l.b16 %v836
        %v928 = vunpack.c.l.b16 %v837
        %v929 = vunpack.c.h.b16 %v837
        %v930 = vunpack.c.l.b16 %v838
        %v931 = vunpack.c.l.b16 %v839
        %v932 = vunpack.c.h.b16 %v839
        %v933 = vunpack.c.l.b16 %v840
        %v934 = vunpack.c.l.b16 %v841
        %v935 = vunpack.c.h.b16 %v841
        %v936 = vunpack.c.l.b16 %v842
        %v937 = vunpack.c.l.b16 %v843
        %v938 = vunpack.c.h.b16 %v843
        %v939 = vunpack.c.l.b16 %v844
        %v940 = vunpack.c.l.b16 %v845
        %v941 = vunpack.c.h.b16 %v845
        %v942 = vunpack.c.l.b16 %v846
        %v943 = vunpack.c.l.b16 %v847
        %v944 = vunpack.c.h.b16 %v847
        %v945 = vunpack.c.l.b16 %v848
        %v946 = vpack.c.b16 %v901, %v898
        %v947 = vpack.c.b16 %v902, %v899
        %v948 = vpack.c.b16 %v903, %v900
        %v949 = vpack.c.b16 %v907, %v904
        %v950 = vpack.c.b16 %v908, %v905
        %v951 = vpack.c.b16 %v909, %v906
        %v952 = vpack.c.b16 %v913, %v910
        %v953 = vpack.c.b16 %v914, %v911
        %v954 = vpack.c.b16 %v915, %v912
        %v955 = vpack.c.b16 %v919, %v916
        %v956 = vpack.c.b16 %v920, %v917
        %v957 = vpack.c.b16 %v921, %v918
        %v958 = vpack.c.b16 %v925, %v922
        %v959 = vpack.c.b16 %v926, %v923
        %v960 = vpack.c.b16 %v927, %v924
        %v961 = vpack.c.b16 %v931, %v928
        %v962 = vpack.c.b16 %v932, %v929
        %v963 = vpack.c.b16 %v933, %v930
        %v964 = vpack.c.b16 %v937, %v934
        %v965 = vpack.c.b16 %v938, %v935
        %v966 = vpack.c.b16 %v939, %v936
        %v967 = vpack.c.b16 %v943, %v940
        %v968 = vpack.c.b16 %v944, %v941
        %v969 = vpack.c.b16 %v945, %v942
        %994 = vmatprep.subr.bf16.mxu0 %v947
        %995 = vmatpush1.bf16.msra.mxu0 %v946
        %996 = vmatprep.subr.bf16.mxu0 %v950
        %997 = vmatpush1.bf16.msra.mxu0 %v949
        %998 = vmatprep.subr.bf16.mxu0 %v953
        %999 = vmatpush1.bf16.msra.mxu0 %v952
        %1000 = vmatprep.subr.bf16.mxu0 %v956
        %1001 = vmatpush1.bf16.msra.mxu0 %v955
        %1002 = vmatprep.subr.bf16.mxu0 %v959
        %1003 = vmatpush1.bf16.msra.mxu0 %v958
        %1004 = vmatprep.subr.bf16.mxu0 %v962
        %1005 = vmatpush1.bf16.msra.mxu0 %v961
        %1006 = vmatprep.subr.bf16.mxu0 %v965
        %1007 = vmatpush1.bf16.msra.mxu0 %v964
        %1008 = vmatprep.subr.bf16.mxu0 %v968
        %1009 = vmatpush1.bf16.msra.mxu0 %v967
        %1010 = vmatprep.subr.bf16.mxu0 0
        %1011 = vmatpush1.bf16.msra.mxu0 0
        %1012 = vmatprep.subr.bf16.mxu0 0
        %1013 = vmatpush1.bf16.msra.mxu0 0
        %1014 = vmatprep.subr.bf16.mxu0 0
        %1015 = vmatpush1.bf16.msra.mxu0 0
        %1016 = vmatprep.subr.bf16.mxu0 0
        %1017 = vmatpush1.bf16.msra.mxu0 0
        %1018 = vmatprep.subr.bf16.mxu0 0
        %1019 = vmatpush1.bf16.msra.mxu0 0
        %1020 = vmatprep.subr.bf16.mxu0 0
        %1021 = vmatpush1.bf16.msra.mxu0 0
        %1022 = vmatprep.subr.bf16.mxu0 0
        %1023 = vmatpush1.bf16.msra.mxu0 0
        %1024 = vmatprep.subr.bf16.mxu0 0
        %1025 = vmatpush1.bf16.msra.mxu0 0
        %1026 = vmatprep.mubr.bf16.mxu0 0
        %1027 = vmatmul.mubr.bf16.gmra.mrb[0].mxu0 %v816
        %v1028 = vpop.f32.mrb[0].mxu0
        %v1029 = vadd.f32 %v854, %v1028
        %v1030 = vpop.f32.mrb[0].mxu0
        %v1031 = vadd.f32 %v858, %v1030
        %v1032 = vpop.f32.mrb[0].mxu0
        %v1033 = vpop.f32.mrb[0].mxu0
        %1034 = vdwg.mxu0
        %1035 = vmatprep.subr.bf16.mxu0 0
        %1036 = vmatpush1.bf16.msra.mxu0 %v948
        %1037 = vmatprep.subr.bf16.mxu0 0
        %1038 = vmatpush1.bf16.msra.mxu0 %v951
        %1039 = vmatprep.subr.bf16.mxu0 0
        %1040 = vmatpush1.bf16.msra.mxu0 %v954
        %1041 = vmatprep.subr.bf16.mxu0 0
        %1042 = vmatpush1.bf16.msra.mxu0 %v957
        %1043 = vmatprep.subr.bf16.mxu0 0
        %1044 = vmatpush1.bf16.msra.mxu0 %v960
        %1045 = vmatprep.subr.bf16.mxu0 0
        %1046 = vmatpush1.bf16.msra.mxu0 %v963
        %1047 = vmatprep.subr.bf16.mxu0 0
        %1048 = vmatpush1.bf16.msra.mxu0 %v966
        %1049 = vmatprep.subr.bf16.mxu0 0
        %1050 = vmatpush1.bf16.msra.mxu0 %v969
        %1051 = vmatprep.subr.bf16.mxu0 0
        %1052 = vmatpush1.bf16.msra.mxu0 0
        %1053 = vmatprep.subr.bf16.mxu0 0
        %1054 = vmatpush1.bf16.msra.mxu0 0
        %1055 = vmatprep.subr.bf16.mxu0 0
        %1056 = vmatpush1.bf16.msra.mxu0 0
        %1057 = vmatprep.subr.bf16.mxu0 0
        %1058 = vmatpush1.bf16.msra.mxu0 0
        %1059 = vmatprep.subr.bf16.mxu0 0
        %1060 = vmatpush1.bf16.msra.mxu0 0
        %1061 = vmatprep.subr.bf16.mxu0 0
        %1062 = vmatpush1.bf16.msra.mxu0 0
        %1063 = vmatprep.subr.bf16.mxu0 0
        %1064 = vmatpush1.bf16.msra.mxu0 0
        %1065 = vmatprep.subr.bf16.mxu0 0
        %1066 = vmatpush1.bf16.msra.mxu0 0
        %1067 = vmatprep.mubr.bf16.mxu0 0
        %1068 = vmatmul.mubr.bf16.gmra.mrb[0].mxu0 %v816
        %v1069 = vpop.f32.mrb[0].mxu0
        %v1070 = vadd.f32 %v862, %v1069
        %v1071 = vpop.f32.mrb[0].mxu0
        %v1072 = vpop.f32.mrb[0].mxu0
        %v1073 = vpop.f32.mrb[0].mxu0
        %1074 = vdwg.mxu0
        %v1075 = vpack.c.bf16 %v1029, %v1029
        %v1076 = vpack.c.bf16 %v1031, %v1031
        %v1077 = vpack.c.bf16 %v1070, %v1070
        %1078 = vmatprep.subr.bf16.mxu0 0
        %1079 = vmatpush1.bf16.xpose.msra.mxu0 %v1076
        %1080 = vmatprep.subr.bf16.mxu0 0
        %1081 = vmatpush1.bf16.xpose.msra.mxu0 0
        %1082 = vmatprep.subr.bf16.mxu0 0
        %1083 = vmatpush1.bf16.xpose.msra.mxu0 0
        %1084 = vmatprep.subr.bf16.mxu0 0
        %1085 = vmatpush1.bf16.xpose.msra.mxu0 0
        %1086 = vmatprep.subr.bf16.mxu0 0
        %1087 = vmatpush1.bf16.xpose.msra.mxu0 0
        %1088 = vmatprep.subr.bf16.mxu0 0
        %1089 = vmatpush1.bf16.xpose.msra.mxu0 0
        %1090 = vmatprep.subr.bf16.mxu0 0
        %1091 = vmatpush1.bf16.xpose.msra.mxu0 0
        %1092 = vmatprep.subr.bf16.mxu0 0
        %1093 = vmatpush1.bf16.xpose.msra.mxu0 0
        %1094 = vmatprep.subr.bf16.mxu0 0
        %1095 = vmatpush1.bf16.xpose.msra.mxu0 0
        %1096 = vmatprep.subr.bf16.mxu0 0
        %1097 = vmatpush1.bf16.xpose.msra.mxu0 0
        %1098 = vmatprep.subr.bf16.mxu0 0
        %1099 = vmatpush1.bf16.xpose.msra.mxu0 0
        %1100 = vmatprep.subr.bf16.mxu0 0
        %1101 = vmatpush1.bf16.xpose.msra.mxu0 0
        %1102 = vmatprep.subr.bf16.mxu0 0
        %1103 = vmatpush1.bf16.xpose.msra.mxu0 0
        %1104 = vmatprep.subr.bf16.mxu0 0
        %1105 = vmatpush1.bf16.xpose.msra.mxu0 0
        %1106 = vmatprep.subr.bf16.mxu0 0
        %1107 = vmatpush1.bf16.xpose.msra.mxu0 0
        %1108 = vmatprep.subr.bf16.mxu0 0
        %1109 = vmatpush1.bf16.xpose.msra.mxu0 0
        %1110 = vmatprep.mubr.bf16.mxu0 0
        %1111 = vmatmul.mubr.bf16.gmra.mrb[0].mxu0 %v1075
        %v1112 = vpop.f32.mrb[0].mxu0
        %v1113 = vadd.f32 0.0, %v1112
        %v1114 = vpop.f32.mrb[0].mxu0
        %v1115 = vpop.f32.mrb[0].mxu0
        %v1116 = vpop.f32.mrb[0].mxu0
        %1117 = vdwg.mxu0
        %vm1118 = vcmask 64512
        %v1119 = vsel %vm1118, %v1113, -inf
        %1120 = vmax.xlane.f32.xlu0 %v1119
        %v1121 = vpop.xlane.xlu0 %1120
        %v1122 = vsub.f32 -inf, %v1121
        %v1123 = vmul.f32 %v1122, 1.442695
        %v1124 = vpow.pop %v1123
        %v1125 = vsub.f32 %v1113, %v1121
        %v1126 = vmul.f32 %v1125, 1.442695
        %v1127 = vpow.pop %v1126
        %v1128 = vmul.f32 %v1124, 0.0
        %v1129 = vsel %vm1118, %v1127, 0.0
        %1130 = vadd.xlane.f32.xlu0 %v1129
        %v1131 = vpop.xlane.xlu0 %1130
        %v1132 = vadd.f32 %v1128, %v1131
        %v1133 = vpack.c.bf16 %v1127, %v1127
        %v1135 = vsel %vm1118, %v1133, 0
        %vm1137 = vcmask 1043456
        %v1139 = vsel %vm1137, %v1077, 0
        %1141 = vmatprep.subr.bf16.mxu0 0
        %1142 = vmatpush1.bf16.msra.mxu0 %v1139
        %1143 = vmatprep.subr.bf16.mxu0 0
        %1144 = vmatpush1.bf16.msra.mxu0 0
        %1145 = vmatprep.subr.bf16.mxu0 0
        %1146 = vmatpush1.bf16.msra.mxu0 0
        %1147 = vmatprep.subr.bf16.mxu0 0
        %1148 = vmatpush1.bf16.msra.mxu0 0
        %1149 = vmatprep.subr.bf16.mxu0 0
        %1150 = vmatpush1.bf16.msra.mxu0 0
        %1151 = vmatprep.subr.bf16.mxu0 0
        %1152 = vmatpush1.bf16.msra.mxu0 0
        %1153 = vmatprep.subr.bf16.mxu0 0
        %1154 = vmatpush1.bf16.msra.mxu0 0
        %1155 = vmatprep.subr.bf16.mxu0 0
        %1156 = vmatpush1.bf16.msra.mxu0 0
        %1157 = vmatprep.subr.bf16.mxu0 0
        %1158 = vmatpush1.bf16.msra.mxu0 0
        %1159 = vmatprep.subr.bf16.mxu0 0
        %1160 = vmatpush1.bf16.msra.mxu0 0
        %1161 = vmatprep.subr.bf16.mxu0 0
        %1162 = vmatpush1.bf16.msra.mxu0 0
        %1163 = vmatprep.subr.bf16.mxu0 0
        %1164 = vmatpush1.bf16.msra.mxu0 0
        %1165 = vmatprep.subr.bf16.mxu0 0
        %1166 = vmatpush1.bf16.msra.mxu0 0
        %1167 = vmatprep.subr.bf16.mxu0 0
        %1168 = vmatpush1.bf16.msra.mxu0 0
        %1169 = vmatprep.subr.bf16.mxu0 0
        %1170 = vmatpush1.bf16.msra.mxu0 0
        %1171 = vmatprep.subr.bf16.mxu0 0
        %1172 = vmatpush1.bf16.msra.mxu0 0
        %1173 = vmatprep.mubr.bf16.mxu0 0
        %1174 = vmatmul.mubr.bf16.gmra.mrb[0].mxu0 %v1135
        %v1175 = vpop.f32.mrb[0].mxu0
        %v1176 = vadd.f32 0.0, %v1175
        %v1177 = vpop.f32.mrb[0].mxu0
        %v1178 = vpop.f32.mrb[0].mxu0
        %v1179 = vpop.f32.mrb[0].mxu0
        %1180 = vdwg.mxu0
        %v1181 = vadd.f32 %v1128, %v1176
        %v1182 = vrcp.pop %v1132
        %v1183 = vmul.f32 %v1181, %v1182
        %v1184 = vpack.c.bf16 %v1183, %v1183
        %v1185 = vld [vmem:[%s664] sm:$0xf]
        %v1186 = vld [vmem:[%s664 + $0x4] sm:$0xf]
        %v1187 = vld [vmem:[%s664 + $0x8] sm:$0xf]
        %v1188 = vld [vmem:[%s664 + $0xc] sm:$0xf]
        %v1189 = vld [vmem:[%s664 + $0x10] sm:$0xf]
        %v1190 = vld [vmem:[%s664 + $0x14] sm:$0xf]
        %v1191 = vld [vmem:[%s664 + $0x18] sm:$0xf]
        %v1192 = vld [vmem:[%s664 + $0x1c] sm:$0xf]
        %v1193 = vld [vmem:[%s664 + $0x20] sm:$0xf]
        %v1194 = vld [vmem:[%s664 + $0x24] sm:$0xf]
        %v1195 = vld [vmem:[%s664 + $0x28] sm:$0xf]
        %v1196 = vld [vmem:[%s664 + $0x2c] sm:$0xf]
        %v1197 = vld [vmem:[%s664 + $0x30] sm:$0xf]
        %v1198 = vld [vmem:[%s664 + $0x34] sm:$0xf]
        %v1199 = vld [vmem:[%s664 + $0x38] sm:$0xf]
        %v1200 = vld [vmem:[%s664 + $0x3c] sm:$0xf]
        %v1201 = vld [vmem:[%s804] sm:$0x1]
        %v1203 = vlaneseq
        %v1204 = vshrl.u32 %v1203, 7
        %v1205 = vsub.s32 0, %v1204
        %v1206 = vrot.slane %v1201, %v1205
        %v1224 = vunpack.c.l.b16 %v1185
        %v1225 = vunpack.c.l.b16 %v1186
        %v1226 = vunpack.c.l.b16 %v1187
        %v1227 = vunpack.c.l.b16 %v1188
        %v1228 = vunpack.c.l.b16 %v1189
        %v1229 = vunpack.c.l.b16 %v1190
        %v1230 = vunpack.c.l.b16 %v1191
        %v1231 = vunpack.c.l.b16 %v1192
        %v1232 = vunpack.c.l.b16 %v1193
        %v1233 = vunpack.c.l.b16 %v1194
        %v1234 = vunpack.c.l.b16 %v1195
        %v1235 = vunpack.c.l.b16 %v1196
        %v1236 = vunpack.c.l.b16 %v1197
        %v1237 = vunpack.c.l.b16 %v1198
        %v1238 = vunpack.c.l.b16 %v1199
        %v1239 = vunpack.c.l.b16 %v1200
        %v1240 = vpack.c.b16 %v1225, %v1224
        %v1241 = vpack.c.b16 %v1227, %v1226
        %v1242 = vpack.c.b16 %v1229, %v1228
        %v1243 = vpack.c.b16 %v1231, %v1230
        %v1244 = vpack.c.b16 %v1233, %v1232
        %v1245 = vpack.c.b16 %v1235, %v1234
        %v1246 = vpack.c.b16 %v1237, %v1236
        %v1247 = vpack.c.b16 %v1239, %v1238
        %1256 = vmatprep.subr.bf16.mxu0 0
        %1257 = vmatpush1.bf16.msra.mxu0 %v1240
        %1258 = vmatprep.subr.bf16.mxu0 0
        %1259 = vmatpush1.bf16.msra.mxu0 %v1241
        %1260 = vmatprep.subr.bf16.mxu0 0
        %1261 = vmatpush1.bf16.msra.mxu0 %v1242
        %1262 = vmatprep.subr.bf16.mxu0 0
        %1263 = vmatpush1.bf16.msra.mxu0 %v1243
        %1264 = vmatprep.subr.bf16.mxu0 0
        %1265 = vmatpush1.bf16.msra.mxu0 %v1244
        %1266 = vmatprep.subr.bf16.mxu0 0
        %1267 = vmatpush1.bf16.msra.mxu0 %v1245
        %1268 = vmatprep.subr.bf16.mxu0 0
        %1269 = vmatpush1.bf16.msra.mxu0 %v1246
        %1270 = vmatprep.subr.bf16.mxu0 0
        %1271 = vmatpush1.bf16.msra.mxu0 %v1247
        %1272 = vmatprep.subr.bf16.mxu0 0
        %1273 = vmatpush1.bf16.msra.mxu0 0
        %1274 = vmatprep.subr.bf16.mxu0 0
        %1275 = vmatpush1.bf16.msra.mxu0 0
        %1276 = vmatprep.subr.bf16.mxu0 0
        %1277 = vmatpush1.bf16.msra.mxu0 0
        %1278 = vmatprep.subr.bf16.mxu0 0
        %1279 = vmatpush1.bf16.msra.mxu0 0
        %1280 = vmatprep.subr.bf16.mxu0 0
        %1281 = vmatpush1.bf16.msra.mxu0 0
        %1282 = vmatprep.subr.bf16.mxu0 0
        %1283 = vmatpush1.bf16.msra.mxu0 0
        %1284 = vmatprep.subr.bf16.mxu0 0
        %1285 = vmatpush1.bf16.msra.mxu0 0
        %1286 = vmatprep.subr.bf16.mxu0 0
        %1287 = vmatpush1.bf16.msra.mxu0 0
        %1288 = vmatprep.mubr.bf16.mxu0 0
        %1289 = vmatmul.mubr.bf16.gmra.mrb[0].mxu0 %v1184
        %v1290 = vpop.f32.mrb[0].mxu0
        %v1291 = vadd.f32 %v1206, %v1290
        %v1292 = vpop.f32.mrb[0].mxu0
        %v1293 = vpop.f32.mrb[0].mxu0
        %v1294 = vpop.f32.mrb[0].mxu0
        %1295 = vdwg.mxu0
        %v1296 = vld [vmem:[%s673] sm:$0xf]
        %v1297 = vadd.f32 %v815, %v1291
        %1298 = vadd.xlane.f32.xlu0 %v1297
        %v1299 = vpop.xlane.xlu0 %1298
        %v1300 = vmul.f32 %v1299, 0.125
        %v1301 = vmul.f32 %v1297, %v1297
        %1302 = vadd.xlane.f32.xlu0 %v1301
        %v1303 = vpop.xlane.xlu0 %1302
        %v1304 = vmul.f32 %v1303, 0.125
        %v1305 = vmul.f32 %v1300, %v1300
        %v1306 = vsub.f32 %v1304, %v1305
        %v1307 = vmax.f32 %v1306, 0.0
        %v1308 = vsub.f32 %v1297, %v1300
        %v1309 = vadd.f32 %v1307, 1e-05
        %v1310 = vrsqrt.pop %v1309
        %v1311 = vmul.f32 %v1308, %v1310
        %v1312 = vlaneseq
        %v1313 = vshrl.u32 %v1312, 7
        %v1314 = vsub.s32 0, %v1313
        %v1315 = vrot.slane %v1296, %v1314
        %v1316 = vmul.f32 %v1311, %v1315
        %v1317 = vlaneseq
        %v1318 = vshrl.u32 %v1317, 7
        %v1319 = vsub.s32 1, %v1318
        %v1320 = vrot.slane %v1296, %v1319
        %v1321 = vadd.f32 %v1316, %v1320
        %v1322 = vpack.c.bf16 %v1321, %v1321
        %v1323 = vld [vmem:[%s682] sm:$0xf]
        %v1324 = vld [vmem:[%s682 + $0x4] sm:$0xf]
        %v1325 = vld [vmem:[%s682 + $0x8] sm:$0xf]
        %v1326 = vld [vmem:[%s682 + $0xc] sm:$0xf]
        %v1327 = vld [vmem:[%s682 + $0x10] sm:$0xf]
        %v1328 = vld [vmem:[%s682 + $0x14] sm:$0xf]
        %v1329 = vld [vmem:[%s682 + $0x18] sm:$0xf]
        %v1330 = vld [vmem:[%s682 + $0x1c] sm:$0xf]
        %v1331 = vld [vmem:[%s682 + $0x20] sm:$0xf]
        %v1332 = vld [vmem:[%s682 + $0x24] sm:$0xf]
        %v1333 = vld [vmem:[%s682 + $0x28] sm:$0xf]
        %v1334 = vld [vmem:[%s682 + $0x2c] sm:$0xf]
        %v1335 = vld [vmem:[%s682 + $0x30] sm:$0xf]
        %v1336 = vld [vmem:[%s682 + $0x34] sm:$0xf]
        %v1337 = vld [vmem:[%s682 + $0x38] sm:$0xf]
        %v1338 = vld [vmem:[%s682 + $0x3c] sm:$0xf]
        %v1339 = vld [vmem:[%s690] sm:$0x1]
        %v1341 = vlaneseq
        %v1342 = vshrl.u32 %v1341, 7
        %v1343 = vsub.s32 0, %v1342
        %v1344 = vrot.slane %v1339, %v1343
        %v1362 = vunpack.c.l.b16 %v1323
        %v1363 = vunpack.c.l.b16 %v1324
        %v1364 = vunpack.c.l.b16 %v1325
        %v1365 = vunpack.c.l.b16 %v1326
        %v1366 = vunpack.c.l.b16 %v1327
        %v1367 = vunpack.c.l.b16 %v1328
        %v1368 = vunpack.c.l.b16 %v1329
        %v1369 = vunpack.c.l.b16 %v1330
        %v1370 = vunpack.c.l.b16 %v1331
        %v1371 = vunpack.c.l.b16 %v1332
        %v1372 = vunpack.c.l.b16 %v1333
        %v1373 = vunpack.c.l.b16 %v1334
        %v1374 = vunpack.c.l.b16 %v1335
        %v1375 = vunpack.c.l.b16 %v1336
        %v1376 = vunpack.c.l.b16 %v1337
        %v1377 = vunpack.c.l.b16 %v1338
        %v1378 = vpack.c.b16 %v1363, %v1362
        %v1379 = vpack.c.b16 %v1365, %v1364
        %v1380 = vpack.c.b16 %v1367, %v1366
        %v1381 = vpack.c.b16 %v1369, %v1368
        %v1382 = vpack.c.b16 %v1371, %v1370
        %v1383 = vpack.c.b16 %v1373, %v1372
        %v1384 = vpack.c.b16 %v1375, %v1374
        %v1385 = vpack.c.b16 %v1377, %v1376
        %1394 = vmatprep.subr.bf16.mxu0 0
        %1395 = vmatpush1.bf16.msra.mxu0 %v1378
        %1396 = vmatprep.subr.bf16.mxu0 0
        %1397 = vmatpush1.bf16.msra.mxu0 %v1379
        %1398 = vmatprep.subr.bf16.mxu0 0
        %1399 = vmatpush1.bf16.msra.mxu0 %v1380
        %1400 = vmatprep.subr.bf16.mxu0 0
        %1401 = vmatpush1.bf16.msra.mxu0 %v1381
        %1402 = vmatprep.subr.bf16.mxu0 0
        %1403 = vmatpush1.bf16.msra.mxu0 %v1382
        %1404 = vmatprep.subr.bf16.mxu0 0
        %1405 = vmatpush1.bf16.msra.mxu0 %v1383
        %1406 = vmatprep.subr.bf16.mxu0 0
        %1407 = vmatpush1.bf16.msra.mxu0 %v1384
        %1408 = vmatprep.subr.bf16.mxu0 0
        %1409 = vmatpush1.bf16.msra.mxu0 %v1385
        %1410 = vmatprep.subr.bf16.mxu0 0
        %1411 = vmatpush1.bf16.msra.mxu0 0
        %1412 = vmatprep.subr.bf16.mxu0 0
        %1413 = vmatpush1.bf16.msra.mxu0 0
        %1414 = vmatprep.subr.bf16.mxu0 0
        %1415 = vmatpush1.bf16.msra.mxu0 0
        %1416 = vmatprep.subr.bf16.mxu0 0
        %1417 = vmatpush1.bf16.msra.mxu0 0
        %1418 = vmatprep.subr.bf16.mxu0 0
        %1419 = vmatpush1.bf16.msra.mxu0 0
        %1420 = vmatprep.subr.bf16.mxu0 0
        %1421 = vmatpush1.bf16.msra.mxu0 0
        %1422 = vmatprep.subr.bf16.mxu0 0
        %1423 = vmatpush1.bf16.msra.mxu0 0
        %1424 = vmatprep.subr.bf16.mxu0 0
        %1425 = vmatpush1.bf16.msra.mxu0 0
        %1426 = vmatprep.mubr.bf16.mxu0 0
        %1427 = vmatmul.mubr.bf16.gmra.mrb[0].mxu0 %v1322
        %v1428 = vpop.f32.mrb[0].mxu0
        %v1429 = vadd.f32 %v1344, %v1428
        %v1430 = vpop.f32.mrb[0].mxu0
        %v1431 = vpop.f32.mrb[0].mxu0
        %v1432 = vpop.f32.mrb[0].mxu0
        %1433 = vdwg.mxu0
        %v1434 = vmax.f32 %v1429, 0.0
        %v1435 = vpack.c.bf16 %v1434, %v1434
        %v1436 = vld [vmem:[%s699] sm:$0xf]
        %v1437 = vld [vmem:[%s699 + $0x4] sm:$0xf]
        %v1438 = vld [vmem:[%s699 + $0x8] sm:$0xf]
        %v1439 = vld [vmem:[%s699 + $0xc] sm:$0xf]
        %v1440 = vld [vmem:[%s699 + $0x10] sm:$0xf]
        %v1441 = vld [vmem:[%s699 + $0x14] sm:$0xf]
        %v1442 = vld [vmem:[%s699 + $0x18] sm:$0xf]
        %v1443 = vld [vmem:[%s699 + $0x1c] sm:$0xf]
        %v1444 = vld [vmem:[%s699 + $0x20] sm:$0xf]
        %v1445 = vld [vmem:[%s699 + $0x24] sm:$0xf]
        %v1446 = vld [vmem:[%s699 + $0x28] sm:$0xf]
        %v1447 = vld [vmem:[%s699 + $0x2c] sm:$0xf]
        %v1448 = vld [vmem:[%s699 + $0x30] sm:$0xf]
        %v1449 = vld [vmem:[%s699 + $0x34] sm:$0xf]
        %v1450 = vld [vmem:[%s699 + $0x38] sm:$0xf]
        %v1451 = vld [vmem:[%s699 + $0x3c] sm:$0xf]
        %v1452 = vld [vmem:[%s707] sm:$0x1]
        %v1454 = vlaneseq
        %v1455 = vshrl.u32 %v1454, 7
        %v1456 = vsub.s32 0, %v1455
        %v1457 = vrot.slane %v1452, %v1456
        %v1475 = vunpack.c.l.b16 %v1436
        %v1476 = vunpack.c.l.b16 %v1437
        %v1477 = vunpack.c.l.b16 %v1438
        %v1478 = vunpack.c.l.b16 %v1439
        %v1479 = vunpack.c.l.b16 %v1440
        %v1480 = vunpack.c.l.b16 %v1441
        %v1481 = vunpack.c.l.b16 %v1442
        %v1482 = vunpack.c.l.b16 %v1443
        %v1483 = vunpack.c.l.b16 %v1444
        %v1484 = vunpack.c.l.b16 %v1445
        %v1485 = vunpack.c.l.b16 %v1446
        %v1486 = vunpack.c.l.b16 %v1447
        %v1487 = vunpack.c.l.b16 %v1448
        %v1488 = vunpack.c.l.b16 %v1449
        %v1489 = vunpack.c.l.b16 %v1450
        %v1490 = vunpack.c.l.b16 %v1451
        %v1491 = vpack.c.b16 %v1476, %v1475
        %v1492 = vpack.c.b16 %v1478, %v1477
        %v1493 = vpack.c.b16 %v1480, %v1479
        %v1494 = vpack.c.b16 %v1482, %v1481
        %v1495 = vpack.c.b16 %v1484, %v1483
        %v1496 = vpack.c.b16 %v1486, %v1485
        %v1497 = vpack.c.b16 %v1488, %v1487
        %v1498 = vpack.c.b16 %v1490, %v1489
        %1507 = vmatprep.subr.bf16.mxu0 0
        %1508 = vmatpush1.bf16.msra.mxu0 %v1491
        %1509 = vmatprep.subr.bf16.mxu0 0
        %1510 = vmatpush1.bf16.msra.mxu0 %v1492
        %1511 = vmatprep.subr.bf16.mxu0 0
        %1512 = vmatpush1.bf16.msra.mxu0 %v1493
        %1513 = vmatprep.subr.bf16.mxu0 0
        %1514 = vmatpush1.bf16.msra.mxu0 %v1494
        %1515 = vmatprep.subr.bf16.mxu0 0
        %1516 = vmatpush1.bf16.msra.mxu0 %v1495
        %1517 = vmatprep.subr.bf16.mxu0 0
        %1518 = vmatpush1.bf16.msra.mxu0 %v1496
        %1519 = vmatprep.subr.bf16.mxu0 0
        %1520 = vmatpush1.bf16.msra.mxu0 %v1497
        %1521 = vmatprep.subr.bf16.mxu0 0
        %1522 = vmatpush1.bf16.msra.mxu0 %v1498
        %1523 = vmatprep.subr.bf16.mxu0 0
        %1524 = vmatpush1.bf16.msra.mxu0 0
        %1525 = vmatprep.subr.bf16.mxu0 0
        %1526 = vmatpush1.bf16.msra.mxu0 0
        %1527 = vmatprep.subr.bf16.mxu0 0
        %1528 = vmatpush1.bf16.msra.mxu0 0
        %1529 = vmatprep.subr.bf16.mxu0 0
        %1530 = vmatpush1.bf16.msra.mxu0 0
        %1531 = vmatprep.subr.bf16.mxu0 0
        %1532 = vmatpush1.bf16.msra.mxu0 0
        %1533 = vmatprep.subr.bf16.mxu0 0
        %1534 = vmatpush1.bf16.msra.mxu0 0
        %1535 = vmatprep.subr.bf16.mxu0 0
        %1536 = vmatpush1.bf16.msra.mxu0 0
        %1537 = vmatprep.subr.bf16.mxu0 0
        %1538 = vmatpush1.bf16.msra.mxu0 0
        %1539 = vmatprep.mubr.bf16.mxu0 0
        %1540 = vmatmul.mubr.bf16.gmra.mrb[0].mxu0 %v1435
        %v1541 = vpop.f32.mrb[0].mxu0
        %v1542 = vadd.f32 %v1457, %v1541
        %v1543 = vpop.f32.mrb[0].mxu0
        %v1544 = vpop.f32.mrb[0].mxu0
        %v1545 = vpop.f32.mrb[0].mxu0
        %1546 = vdwg.mxu0
        %v1547 = vadd.f32 %v1321, %v1542
        %1548 = vadd.xlane.f32.xlu0 %v1547
        %v1549 = vpop.xlane.xlu0 %1548
        %v1550 = vmul.f32 %v1549, 0.125
        %v1551 = vmul.f32 %v1547, %v1547
        %1552 = vadd.xlane.f32.xlu0 %v1551
        %v1553 = vpop.xlane.xlu0 %1552
        %v1554 = vmul.f32 %v1553, 0.125
        %v1555 = vmul.f32 %v1550, %v1550
        %v1556 = vsub.f32 %v1554, %v1555
        %v1557 = vmax.f32 %v1556, 0.0
        %v1558 = vsub.f32 %v1547, %v1550
        %v1559 = vadd.f32 %v1557, 1e-05
        %v1560 = vrsqrt.pop %v1559
        %v1561 = vmul.f32 %v1558, %v1560
        %v1562 = vlaneseq
        %v1563 = vshrl.u32 %v1562, 7
        %v1564 = vsub.s32 2, %v1563
        %v1565 = vrot.slane %v1296, %v1564
        %v1566 = vmul.f32 %v1561, %v1565
        %v1567 = vlaneseq
        %v1568 = vshrl.u32 %v1567, 7
        %v1569 = vsub.s32 3, %v1568
        %v1570 = vrot.slane %v1296, %v1569
        %v1571 = vadd.f32 %v1566, %v1570
        %1572 = vst [vmem:[#allocation2] sm:$0xff] %v1571
        %p1573 = scmp.eq.s32.totalorder %s46, 1
        // Predicated region
        $region121: #{transformer_forward.1} parent=75 // pred_check
          %p1574 = pneg %p1573
        $region122: #{transformer_forward.1} parent=75 // pred_check_branch
          %1576 = sbr.rel (%p1574) target = $region124
        $region123: #{transformer_forward.1} parent=75 // pred_region
          %v1577 = vld [vmem:[#allocation2] sm:$0xff]
          %v1578 = vrot.slane %v1577, 4
          %v1579 = vadd.f32 %v1577, %v1578
          %v1580 = vrot.slane %v1579, 2
          %v1581 = vadd.f32 %v1579, %v1580
          %v1582 = vrot.slane %v1581, 1
          %v1583 = vadd.f32 %v1581, %v1582
          %v1584 = vrcp.pop 8.0
          %v1585 = vmul.f32 %v1583, %v1584
          %v1586 = vpack.c.bf16 %v1585, %v1585
          %v1587 = vld [vmem:[#allocation16] sm:$0xf]
          %v1588 = vld [vmem:[#allocation16 + $0x4] sm:$0xf]
          %v1589 = vld [vmem:[#allocation16 + $0x8] sm:$0xf]
          %v1590 = vld [vmem:[#allocation16 + $0xc] sm:$0xf]
          %v1591 = vld [vmem:[#allocation16 + $0x10] sm:$0xf]
          %v1592 = vld [vmem:[#allocation16 + $0x14] sm:$0xf]
          %v1593 = vld [vmem:[#allocation16 + $0x18] sm:$0xf]
          %v1594 = vld [vmem:[#allocation16 + $0x1c] sm:$0xf]
          %v1595 = vld [vmem:[#allocation16 + $0x20] sm:$0xf]
          %v1596 = vld [vmem:[#allocation16 + $0x24] sm:$0xf]
          %v1597 = vld [vmem:[#allocation16 + $0x28] sm:$0xf]
          %v1598 = vld [vmem:[#allocation16 + $0x2c] sm:$0xf]
          %v1599 = vld [vmem:[#allocation16 + $0x30] sm:$0xf]
          %v1600 = vld [vmem:[#allocation16 + $0x34] sm:$0xf]
          %v1601 = vld [vmem:[#allocation16 + $0x38] sm:$0xf]
          %v1602 = vld [vmem:[#allocation16 + $0x3c] sm:$0xf]
          %v1603 = vld [vmem:[%s11] sm:$0x1]
          %v1620 = vunpack.c.l.b16 %v1587
          %v1621 = vunpack.c.l.b16 %v1588
          %v1622 = vunpack.c.l.b16 %v1589
          %v1623 = vunpack.c.l.b16 %v1590
          %v1624 = vunpack.c.l.b16 %v1591
          %v1625 = vunpack.c.l.b16 %v1592
          %v1626 = vunpack.c.l.b16 %v1593
          %v1627 = vunpack.c.l.b16 %v1594
          %v1628 = vunpack.c.l.b16 %v1595
          %v1629 = vunpack.c.l.b16 %v1596
          %v1630 = vunpack.c.l.b16 %v1597
          %v1631 = vunpack.c.l.b16 %v1598
          %v1632 = vunpack.c.l.b16 %v1599
          %v1633 = vunpack.c.l.b16 %v1600
          %v1634 = vunpack.c.l.b16 %v1601
          %v1635 = vunpack.c.l.b16 %v1602
          %v1636 = vpack.c.b16 %v1621, %v1620
          %v1637 = vpack.c.b16 %v1623, %v1622
          %v1638 = vpack.c.b16 %v1625, %v1624
          %v1639 = vpack.c.b16 %v1627, %v1626
          %v1640 = vpack.c.b16 %v1629, %v1628
          %v1641 = vpack.c.b16 %v1631, %v1630
          %v1642 = vpack.c.b16 %v1633, %v1632
          %v1643 = vpack.c.b16 %v1635, %v1634
          %1652 = vmatprep.subr.bf16.mxu0 0
          %1653 = vmatpush1.bf16.msra.mxu0 %v1636
          %1654 = vmatprep.subr.bf16.mxu0 0
          %1655 = vmatpush1.bf16.msra.mxu0 %v1637
          %1656 = vmatprep.subr.bf16.mxu0 0
          %1657 = vmatpush1.bf16.msra.mxu0 %v1638
          %1658 = vmatprep.subr.bf16.mxu0 0
          %1659 = vmatpush1.bf16.msra.mxu0 %v1639
          %1660 = vmatprep.subr.bf16.mxu0 0
          %1661 = vmatpush1.bf16.msra.mxu0 %v1640
          %1662 = vmatprep.subr.bf16.mxu0 0
          %1663 = vmatpush1.bf16.msra.mxu0 %v1641
          %1664 = vmatprep.subr.bf16.mxu0 0
          %1665 = vmatpush1.bf16.msra.mxu0 %v1642
          %1666 = vmatprep.subr.bf16.mxu0 0
          %1667 = vmatpush1.bf16.msra.mxu0 %v1643
          %1668 = vmatprep.subr.bf16.mxu0 0
          %1669 = vmatpush1.bf16.msra.mxu0 0
          %1670 = vmatprep.subr.bf16.mxu0 0
          %1671 = vmatpush1.bf16.msra.mxu0 0
          %1672 = vmatprep.subr.bf16.mxu0 0
          %1673 = vmatpush1.bf16.msra.mxu0 0
          %1674 = vmatprep.subr.bf16.mxu0 0
          %1675 = vmatpush1.bf16.msra.mxu0 0
          %1676 = vmatprep.subr.bf16.mxu0 0
          %1677 = vmatpush1.bf16.msra.mxu0 0
          %1678 = vmatprep.subr.bf16.mxu0 0
          %1679 = vmatpush1.bf16.msra.mxu0 0
          %1680 = vmatprep.subr.bf16.mxu0 0
          %1681 = vmatpush1.bf16.msra.mxu0 0
          %1682 = vmatprep.subr.bf16.mxu0 0
          %1683 = vmatpush1.bf16.msra.mxu0 0
          %1684 = vmatprep.mubr.bf16.mxu0 0
          %1685 = vmatmul.mubr.bf16.gmra.mrb[0].mxu0 %v1586
          %v1686 = vpop.f32.mrb[0].mxu0
          %v1687 = vadd.f32 %v1603, %v1686
          %v1688 = vpop.f32.mrb[0].mxu0
          %v1689 = vpop.f32.mrb[0].mxu0
          %v1690 = vpop.f32.mrb[0].mxu0
          %1691 = vdwg.mxu0
          %v1692 = vmax.f32 %v1687, 0.0
          %v1693 = vpack.c.bf16 %v1692, %v1692
          %v1694 = vld [vmem:[%s12] sm:$0xf]
          %v1695 = vld [vmem:[%s12 + $0x4] sm:$0xf]
          %v1696 = vld [vmem:[%s12 + $0x8] sm:$0xf]
          %v1697 = vld [vmem:[%s12 + $0xc] sm:$0xf]
          %v1698 = vld [vmem:[%s12 + $0x10] sm:$0xf]
          %v1699 = vld [vmem:[%s12 + $0x14] sm:$0xf]
          %v1700 = vld [vmem:[%s12 + $0x18] sm:$0xf]
          %v1701 = vld [vmem:[%s12 + $0x1c] sm:$0xf]
          %v1702 = vld [vmem:[%s12 + $0x20] sm:$0xf]
          %v1703 = vld [vmem:[%s12 + $0x24] sm:$0xf]
          %v1704 = vld [vmem:[%s12 + $0x28] sm:$0xf]
          %v1705 = vld [vmem:[%s12 + $0x2c] sm:$0xf]
          %v1706 = vld [vmem:[%s12 + $0x30] sm:$0xf]
          %v1707 = vld [vmem:[%s12 + $0x34] sm:$0xf]
          %v1708 = vld [vmem:[%s12 + $0x38] sm:$0xf]
          %v1709 = vld [vmem:[%s12 + $0x3c] sm:$0xf]
          %v1710 = vld [vmem:[#allocation17] sm:$0x1]
          %v1727 = vunpack.c.l.b16 %v1694
          %v1728 = vunpack.c.l.b16 %v1695
          %v1729 = vunpack.c.l.b16 %v1696
          %v1730 = vunpack.c.l.b16 %v1697
          %v1731 = vunpack.c.l.b16 %v1698
          %v1732 = vunpack.c.l.b16 %v1699
          %v1733 = vunpack.c.l.b16 %v1700
          %v1734 = vunpack.c.l.b16 %v1701
          %v1735 = vunpack.c.l.b16 %v1702
          %v1736 = vunpack.c.l.b16 %v1703
          %v1737 = vunpack.c.l.b16 %v1704
          %v1738 = vunpack.c.l.b16 %v1705
          %v1739 = vunpack.c.l.b16 %v1706
          %v1740 = vunpack.c.l.b16 %v1707
          %v1741 = vunpack.c.l.b16 %v1708
          %v1742 = vunpack.c.l.b16 %v1709
          %v1743 = vpack.c.b16 %v1728, %v1727
          %v1744 = vpack.c.b16 %v1730, %v1729
          %v1745 = vpack.c.b16 %v1732, %v1731
          %v1746 = vpack.c.b16 %v1734, %v1733
          %v1747 = vpack.c.b16 %v1736, %v1735
          %v1748 = vpack.c.b16 %v1738, %v1737
          %v1749 = vpack.c.b16 %v1740, %v1739
          %v1750 = vpack.c.b16 %v1742, %v1741
          %1759 = vmatprep.subr.bf16.mxu0 0
          %1760 = vmatpush1.bf16.msra.mxu0 %v1743
          %1761 = vmatprep.subr.bf16.mxu0 0
          %1762 = vmatpush1.bf16.msra.mxu0 %v1744
          %1763 = vmatprep.subr.bf16.mxu0 0
          %1764 = vmatpush1.bf16.msra.mxu0 %v1745
          %1765 = vmatprep.subr.bf16.mxu0 0
          %1766 = vmatpush1.bf16.msra.mxu0 %v1746
          %1767 = vmatprep.subr.bf16.mxu0 0
          %1768 = vmatpush1.bf16.msra.mxu0 %v1747
          %1769 = vmatprep.subr.bf16.mxu0 0
          %1770 = vmatpush1.bf16.msra.mxu0 %v1748
          %1771 = vmatprep.subr.bf16.mxu0 0
          %1772 = vmatpush1.bf16.msra.mxu0 %v1749
          %1773 = vmatprep.subr.bf16.mxu0 0
          %1774 = vmatpush1.bf16.msra.mxu0 %v1750
          %1775 = vmatprep.subr.bf16.mxu0 0
          %1776 = vmatpush1.bf16.msra.mxu0 0
          %1777 = vmatprep.subr.bf16.mxu0 0
          %1778 = vmatpush1.bf16.msra.mxu0 0
          %1779 = vmatprep.subr.bf16.mxu0 0
          %1780 = vmatpush1.bf16.msra.mxu0 0
          %1781 = vmatprep.subr.bf16.mxu0 0
          %1782 = vmatpush1.bf16.msra.mxu0 0
          %1783 = vmatprep.subr.bf16.mxu0 0
          %1784 = vmatpush1.bf16.msra.mxu0 0
          %1785 = vmatprep.subr.bf16.mxu0 0
          %1786 = vmatpush1.bf16.msra.mxu0 0
          %1787 = vmatprep.subr.bf16.mxu0 0
          %1788 = vmatpush1.bf16.msra.mxu0 0
          %1789 = vmatprep.subr.bf16.mxu0 0
          %1790 = vmatpush1.bf16.msra.mxu0 0
          %1791 = vmatprep.mubr.bf16.mxu0 0
          %1792 = vmatmul.mubr.bf16.gmra.mrb[0].mxu0 %v1693
          %v1793 = vpop.f32.mrb[0].mxu0
          %v1794 = vadd.f32 %v1710, %v1793
          %v1795 = vpop.f32.mrb[0].mxu0
          %v1796 = vpop.f32.mrb[0].mxu0
          %v1797 = vpop.f32.mrb[0].mxu0
          %1798 = vdwg.mxu0
          %v1799 = vxor.u32 %v1794, 2147483648
          %v1800 = vmul.f32 %v1799, 1.442695
          %v1801 = vpow.pop %v1800
          %v1802 = vadd.f32 %v1801, 1.0
          %v1803 = vrcp.pop %v1802
          %v1804 = vmul.f32 1.0, %v1803
          %1805 = vst [vmem:[%s807] sm:$0x1] %v1804
        $region124: #{transformer_forward.1} parent=75 // pred_fallthru
          _
        %p1806 = scmp.lt.s32.totalorder %s45, 1
        %s1807 = scalar_select %p1806, %s45, 1
        %s1808 = scalar_lea.vmem %s14, %s1807
        // Predicated region
        $region125: #{transformer_forward.1} parent=75 // pred_check
          %p1809 = pneg %p415
        $region126: #{transformer_forward.1} parent=75 // pred_check_branch
          %1811 = sbr.rel (%p1809) target = $region128
        $region127: #{transformer_forward.1} parent=75 // pred_region
          _
        $region128: #{transformer_forward.1} parent=75 // pred_fallthru
          _
      $region76: #{transformer_forward.1} parent=5 // pred_fallthru
        _
      %p1812 = scmp.le.s32.totalorder 2, %s36
      // Predicated region
      $region129: #{transformer_forward.1} parent=5 // pred_check
        %p1813 = pneg %p1812
      $region130: #{transformer_forward.1} parent=5 // pred_check_branch
        %1815 = sbr.rel (%p1813) target = $region132
      $region131: #{transformer_forward.1} parent=5 // pred_region
        %s1816 = ssub.s32 %s36, 2
        // Predicated region
        $region133: #{transformer_forward.1} parent=131 // pred_check
          %p1817 = pneg %p421
        $region134: #{transformer_forward.1} parent=131 // pred_check_branch
          %1819 = sbr.rel (%p1817) target = $region136
        $region135: #{transformer_forward.1} parent=131 // pred_region
          %p1820 = scmp.lt.s32.totalorder %s47, 1
          %s1821 = scalar_select %p1820, %s47, 1
          %s1822 = scalar_lea.vmem %s14, %s1821
        $region136: #{transformer_forward.1} parent=131 // pred_fallthru
          _
      $region132: #{transformer_forward.1} parent=5 // pred_fallthru
        _
    $region6: #{transformer_forward.1} parent=1 // loop_footer
      %s40 = sadd.s32 1, %s36
    $region7: #{transformer_forward.1} parent=1 // loop_footer_branch
      %35 = sbr.rel target = $region3
    $region8: #{transformer_forward.1} parent=1 // loop_exit
      _
    %1823 = vsyncpa [#allocation4], 1
    %s1824 = scalar_lea.sflag [#allocation4], 1
    %1825 = vsyncpa %s1824, 1
    %1826 = vsyncpa [#allocation6], 1
    %s1827 = scalar_lea.sflag [#allocation6], 1
    %1828 = vsyncpa %s1827, 1
    %1829 = vsyncpa [#allocation9], 1
    %s1830 = scalar_lea.sflag [#allocation9], 1
    %1831 = vsyncpa %s1830, 1
    %1832 = vsyncpa [#allocation12], 1
    %s1833 = scalar_lea.sflag [#allocation12], 1
    %1834 = vsyncpa %s1833, 1
    %1835 = vsyncpa [#allocation15], 1
    %s1836 = scalar_lea.sflag [#allocation15], 1
    %1837 = vsyncpa %s1836, 1
    %1838 = vsyncpa [#allocation18], 1

</llo_original>
